<compile_context>
chip_gen: v7x
topology: tpu7x:2x2x1
jax: 0.10.0
libtpu: 0.0.40
codegen_flags: <defaults>
</compile_context>

<pallas_src>
import functools

import jax
import jax.numpy as jnp
import numpy as np
from jax import lax
from jax.experimental import pallas as pl
from jax.experimental.pallas import tpu as pltpu

_OUT_ROWS = 8  # sublane rows of the lane-dense per-tile output slab


# ----------------------------------------------------------------------------
# Pallas kernel: one grid step processes a tile of `tn` (query, proto) pairs.
#   p_ref     : [tn*hw, K]      im2col patches, bf16 (K = 9 * 2C)
#   cw_ref    : [K, C]          conv weight, bf16, (kh, kw, ci) x co
#   scale_ref : [1, C]          folded BN scale  (gamma / sqrt(var + eps))
#   shift_ref : [1, C]          folded BN shift  (beta - mean * scale)
#   pool_ref  : [tn, tn*hw]     block-diagonal ones (per-image pooling matrix)
#   w1_ref    : [C, hid]  b1_ref: [1, hid]     (hid = 384, zero-padded from 300)
#   w2t_ref   : [8, hid]  b2_ref: [1, 1]       (w2^T replicated over 8 sublanes)
#   o_ref     : [8, tn]         sigmoid relation scores (all 8 rows identical)
# ----------------------------------------------------------------------------
def relation_head_kernel(p_ref, cw_ref, scale_ref, shift_ref, pool_ref,
                         w1_ref, b1_ref, w2t_ref, b2_ref, o_ref, *, inv_hw):
    # 3x3 conv of the whole tile as ONE im2col matmul (bf16 x bf16 -> f32 on MXU).
    conv = jnp.dot(p_ref[...], cw_ref[...],
                   preferred_element_type=jnp.float32)              # [tn*hw, C]
    h = jnp.maximum(conv * scale_ref[...] + shift_ref[...], 0.0)    # folded BN + ReLU
    # Global average pool over each image's hw rows: pooling matmul, then 1/hw.
    g = jnp.dot(pool_ref[...], h,
                preferred_element_type=jnp.float32) * inv_hw        # [tn, C]
    # Linear(C, 300) (zero-padded lanes) + LeakyReLU(0.1).
    z1 = jnp.dot(g, w1_ref[...],
                 preferred_element_type=jnp.float32) + b1_ref[...]  # [tn, hid]
    z1 = jnp.where(z1 > 0, z1, 0.1 * z1)
    # Linear(300, 1): contract z1's lane dim against w2^T so the result is a
    # lane-dense [8, tn] slab (no 1-lane masked stores, no transpose needed).
    z2 = lax.dot_general(w2t_ref[...], z1,
                         dimension_numbers=(((1,), (1,)), ((), ())),
                         preferred_element_type=jnp.float32) + b2_ref[...]
    o_ref[...] = (1.0 / (1.0 + jnp.exp(-z2))).astype(o_ref.dtype)   # Sigmoid


def relation_head_pallas(patches2d, cw2d, bn_scale, bn_shift,
                         w1, b1, w2t, b2, *, hw, tn):
    rows, k = patches2d.shape
    assert rows % (tn * hw) == 0
    grid_n = rows // (tn * hw)
    c = cw2d.shape[1]
    hid = w1.shape[1]
    # Block-diagonal block-of-ones pooling matrix; constant index map -> resident.
    pool = (jnp.arange(tn * hw, dtype=jnp.int32)[None, :] // hw
            == jnp.arange(tn, dtype=jnp.int32)[:, None]).astype(jnp.float32)

    out = pl.pallas_call(
        functools.partial(relation_head_kernel, inv_hw=1.0 / hw),
        out_shape=jax.ShapeDtypeStruct((grid_n * _OUT_ROWS, tn), jnp.float32),
        grid_spec=pltpu.PrefetchScalarGridSpec(
            num_scalar_prefetch=0,
            grid=(grid_n,),
            in_specs=[
                pl.BlockSpec((tn * hw, k), lambda t: (t, 0)),      # patches (bf16)
                pl.BlockSpec((k, c), lambda t: (0, 0)),            # conv weight (bf16)
                pl.BlockSpec((1, c), lambda t: (0, 0)),            # BN scale
                pl.BlockSpec((1, c), lambda t: (0, 0)),            # BN shift
                pl.BlockSpec((tn, tn * hw), lambda t: (0, 0)),     # pooling matrix
                pl.BlockSpec((c, hid), lambda t: (0, 0)),          # linear1 W (padded)
                pl.BlockSpec((1, hid), lambda t: (0, 0)),          # linear1 b (padded)
                pl.BlockSpec((_OUT_ROWS, hid), lambda t: (0, 0)),  # linear2 W^T (repl.)
                pl.BlockSpec((1, 1), lambda t: (0, 0)),            # linear2 b
            ],
            out_specs=pl.BlockSpec((_OUT_ROWS, tn), lambda t: (t, 0)),
        ),
        compiler_params=pltpu.CompilerParams(
            dimension_semantics=("parallel",),
            vmem_limit_bytes=32 * 1024 * 1024),
    )(patches2d, cw2d, bn_scale, bn_shift, pool, w1, b1, w2t, b2)
    # Row 0 of each 8-row slab holds the tile's scores (all rows are identical).
    return out.reshape(grid_n, _OUT_ROWS, tn)[:, 0, :].reshape(grid_n * tn)


# ----------------------------------------------------------------------------
# Glue: prototype / query composition + im2col (pure-JAX layout plumbing).
# ----------------------------------------------------------------------------
def compose_pairs_nhwc(x_shot, x_pseudo, x_query):
    # x_shot  : [B, way, shot,   C, H, W], x_pseudo: [B, way, pseudo, C, H, W]
    # x_query : [B, n_query,     C, H, W]
    B, W, _, C, H, Wd = x_shot.shape
    Q = x_query.shape[1]
    shots = jnp.concatenate([x_shot, x_pseudo], axis=2)            # [B,W,S+P,C,H,Wd]
    protos = shots.mean(axis=2)[:, None]                           # [B,1,W,C,H,Wd]
    q = x_query[:, :, None]                                        # [B,Q,1,C,H,Wd]
    q_e = jnp.broadcast_to(q, (B, Q, W, C, H, Wd))
    p_e = jnp.broadcast_to(protos, (B, Q, W, C, H, Wd))
    expanded = jnp.concatenate([q_e, p_e], axis=3)                 # [B,Q,W,2C,H,Wd]
    flat = expanded.reshape(B * Q * W, 2 * C, H, Wd)               # NCHW
    x_nhwc = jnp.transpose(flat, (0, 2, 3, 1))                     # NHWC
    return x_nhwc, (B, Q, W)


def im2col_3x3(x_nhwc):
    n, h, w, c = x_nhwc.shape
    xp = jnp.pad(x_nhwc, ((0, 0), (1, 1), (1, 1), (0, 0)))
    patches = jnp.stack(
        [xp[:, kh:kh + h, kw:kw + w, :] for kh in range(3) for kw in range(3)],
        axis=3)                                                    # [N,H,W,9,2C]
    return patches.reshape(n, h * w, 9 * c)                        # [N, HW, 9*2C]


def _choose_tile_pairs(n, tn_max=128):
    # Multiples of 8, capped at 128 (v7x-safe VMEM), >= 2 grid steps when possible.
    if n >= 2 * tn_max:
        return tn_max
    half = (n + 1) // 2
    return max(8, min(((half + 7) // 8) * 8, tn_max))


def _pad_last(a, target):
    return jnp.pad(a, ((0, 0), (0, target - a.shape[-1])))


def relation_net_forward(params, x_shot, x_pseudo, x_query):
    x_nhwc, structure = compose_pairs_nhwc(x_shot, x_pseudo, x_query)
    n, h, w, _ = x_nhwc.shape
    hw = h * w
    patches2d = im2col_3x3(x_nhwc).reshape(n * hw, -1)             # [N*HW, 9*2C]
    tn = _choose_tile_pairs(n)
    n_pad = ((n + tn - 1) // tn) * tn
    if n_pad != n:
        patches2d = jnp.pad(patches2d, ((0, (n_pad - n) * hw), (0, 0)))
    patches2d = patches2d.astype(jnp.bfloat16)                     # halve HBM bytes

    cw = params["cw_hwio"]
    c_in2, c_out = cw.shape[2], cw.shape[3]
    cw2d = cw.astype(jnp.bfloat16).reshape(9 * c_in2, c_out)       # matches im2col order

    hid = params["w1"].shape[1]
    hid_p = ((hid + 127) // 128) * 128                             # 300 -> 384
    w1 = _pad_last(params["w1"], hid_p)
    b1 = _pad_last(params["b1"], hid_p)
    w2t = jnp.tile(_pad_last(params["w2"].T, hid_p), (_OUT_ROWS, 1))   # [8, 384]

    scores = relation_head_pallas(patches2d, cw2d,
                                  params["bn_scale"], params["bn_shift"],
                                  w1, b1, w2t, params["b2"], hw=hw, tn=tn)
    logits = scores[:n].reshape(structure)                         # [B, n_query, way]
    return logits, []


# ----------------------------------------------------------------------------
# Pure-JAX references (lax.conv) to validate the Pallas kernel.
# ----------------------------------------------------------------------------
def relation_net_reference(params, x_shot, x_pseudo, x_query,
                           *, match_kernel_precision=False):
    x_nhwc, structure = compose_pairs_nhwc(x_shot, x_pseudo, x_query)
    w = params["cw_hwio"]
    if match_kernel_precision:  # round conv inputs to bf16 exactly like the kernel
        x_nhwc = x_nhwc.astype(jnp.bfloat16).astype(jnp.float32)
        w = w.astype(jnp.bfloat16).astype(jnp.float32)
    c_out = w.shape[-1]
    with jax.default_matmul_precision("highest"):
        conv = lax.conv_general_dilated(
            x_nhwc, w, (1, 1), ((1, 1), (1, 1)),
            dimension_numbers=("NHWC", "HWIO", "NHWC"))
        h = conv * params["bn_scale"].reshape(1, 1, 1, c_out) \
            + params["bn_shift"].reshape(1, 1, 1, c_out)
        h = jnp.maximum(h, 0.0)
        g = h.mean(axis=(1, 2))                                    # [N, C]
        z1 = g @ params["w1"] + params["b1"]
        z1 = jnp.where(z1 > 0, z1, 0.1 * z1)
        z2 = z1 @ params["w2"] + params["b2"]
    return jax.nn.sigmoid(z2).reshape(structure), []


# ----------------------------------------------------------------------------
# Deterministic parameter construction (synthetic, matches module __init__ shapes).
# ----------------------------------------------------------------------------
def make_params(key, hdim, mlp_hidden=300):
    ks = jax.random.split(key, 8)
    c_in, c_out = 2 * hdim, hdim
    cw_hwio = 0.05 * jax.random.normal(ks[0], (3, 3, c_in, c_out), jnp.float32)
    gamma = 1.0 + 0.1 * jax.random.normal(ks[1], (c_out,), jnp.float32)
    beta = 0.1 * jax.random.normal(ks[2], (c_out,), jnp.float32)
    run_mean = 0.1 * jax.random.normal(ks[3], (c_out,), jnp.float32)
    run_var = jax.random.uniform(ks[4], (c_out,), jnp.float32, 0.5, 1.5)
    eps = 1e-5
    bn_scale = gamma / jnp.sqrt(run_var + eps)
    bn_shift = beta - run_mean * bn_scale
    w1 = jax.random.normal(ks[5], (c_out, mlp_hidden), jnp.float32) / np.sqrt(c_out)
    b1 = 0.1 * jax.random.normal(ks[6], (1, mlp_hidden), jnp.float32)
    w2 = jax.random.normal(ks[7], (mlp_hidden, 1), jnp.float32) / np.sqrt(mlp_hidden)
    b2 = jnp.zeros((1, 1), jnp.float32)
    temp = jnp.float32(10.0)  # learnable temp (unused in forward)
    return {
        "cw_hwio": cw_hwio,
        "bn_scale": bn_scale.reshape(1, c_out),
        "bn_shift": bn_shift.reshape(1, c_out),
        "w1": w1, "b1": b1, "w2": w2, "b2": b2,
        "temp": temp,
    }


if __name__ == "__main__":
    # Small few-shot problem: B*Q*way = 2*4*2 = 16 (query, proto) pairs -> tn=8, grid=2.
    B, n_way, n_shot, n_pseudo, n_query = 2, 2, 1, 2, 4
    hdim, H, W = 32, 6, 6

    key = jax.random.PRNGKey(0)
    k_par, k_s, k_p, k_q = jax.random.split(key, 4)
    params = make_params(k_par, hdim)

    x_shot = jax.random.normal(k_s, (B, n_way, n_shot, hdim, H, W), jnp.float32)
    x_pseudo = jax.random.normal(k_p, (B, n_way, n_pseudo, hdim, H, W), jnp.float32)
    x_query = jax.random.normal(k_q, (B, n_query, hdim, H, W), jnp.float32)

    fwd = jax.jit(relation_net_forward)
    logits, _ = fwd(params, x_shot, x_pseudo, x_query)
    logits = jax.block_until_ready(logits)
    assert logits.shape == (B, n_query, n_way), logits.shape

    # Tight check vs a reference that rounds conv inputs to bf16 like the kernel.
    ref_m, _ = relation_net_reference(params, x_shot, x_pseudo, x_query,
                                      match_kernel_precision=True)
    np.testing.assert_allclose(np.asarray(logits), np.asarray(ref_m),
                               rtol=2e-3, atol=2e-3)
    # Loose check vs the full-f32 reference (true module semantics).
    ref_f, _ = relation_net_reference(params, x_shot, x_pseudo, x_query)
    np.testing.assert_allclose(np.asarray(logits), np.asarray(ref_f),
                               rtol=2e-2, atol=2e-2)
    print("KERNEL_OK")
</pallas_src>

<mosaic_0001>
module attributes {stable_mosaic.version = 11 : i64} {
  func.func @relation_head_kernel(%arg0: i32, %arg1: memref<288x576xbf16, #tpu.memory_space<vmem>>, %arg2: memref<576x32xbf16, #tpu.memory_space<vmem>>, %arg3: memref<1x32xf32, #tpu.memory_space<vmem>>, %arg4: memref<1x32xf32, #tpu.memory_space<vmem>>, %arg5: memref<8x288xf32, #tpu.memory_space<vmem>>, %arg6: memref<32x384xf32, #tpu.memory_space<vmem>>, %arg7: memref<1x384xf32, #tpu.memory_space<vmem>>, %arg8: memref<8x384xf32, #tpu.memory_space<vmem>>, %arg9: memref<1x1xf32, #tpu.memory_space<vmem>>, %arg10: memref<8x8xf32, #tpu.memory_space<vmem>>) attributes {dimension_semantics = [#tpu.dimension_semantics<parallel>], iteration_bounds = array<i64: 2>, scalar_prefetch = 0 : i64, scratch_operands = 0 : i64, tpu.core_type = #tpu.core_type<tc>, window_params = [{transform_indices = @transform_0, window_bounds = array<i64: 288, 576>}, {pipeline_mode = #tpu.pipeline_mode<synchronous>, transform_indices = @transform_1, window_bounds = array<i64: 576, 32>}, {pipeline_mode = #tpu.pipeline_mode<synchronous>, transform_indices = @transform_2, window_bounds = array<i64: 1, 32>}, {pipeline_mode = #tpu.pipeline_mode<synchronous>, transform_indices = @transform_3, window_bounds = array<i64: 1, 32>}, {pipeline_mode = #tpu.pipeline_mode<synchronous>, transform_indices = @transform_4, window_bounds = array<i64: 8, 288>}, {pipeline_mode = #tpu.pipeline_mode<synchronous>, transform_indices = @transform_5, window_bounds = array<i64: 32, 384>}, {pipeline_mode = #tpu.pipeline_mode<synchronous>, transform_indices = @transform_6, window_bounds = array<i64: 1, 384>}, {pipeline_mode = #tpu.pipeline_mode<synchronous>, transform_indices = @transform_7, window_bounds = array<i64: 8, 384>}, {pipeline_mode = #tpu.pipeline_mode<synchronous>, transform_indices = @transform_8, window_bounds = array<i64: 1, 1>}, {transform_indices = @transform_9, window_bounds = array<i64: 8, 8>}]} {
    %c0 = arith.constant 0 : index
    %c0_0 = arith.constant 0 : index
    %0 = vector.load %arg1[%c0, %c0_0] : memref<288x576xbf16, #tpu.memory_space<vmem>>, vector<288x576xbf16>
    %c0_1 = arith.constant 0 : index
    %c0_2 = arith.constant 0 : index
    %1 = vector.load %arg2[%c0_1, %c0_2] : memref<576x32xbf16, #tpu.memory_space<vmem>>, vector<576x32xbf16>
    %cst = arith.constant dense<0.000000e+00> : vector<288x32xf32>
    %2 = tpu.matmul %0, %1, %cst {dimension_numbers = #tpu.dot_dimension_numbers<[1], [0], [0], [1], [0, 0, 1, 1], [], []>} : vector<288x576xbf16>, vector<576x32xbf16>, vector<288x32xf32> -> vector<288x32xf32>
    %c0_3 = arith.constant 0 : index
    %c0_4 = arith.constant 0 : index
    %3 = vector.load %arg3[%c0_3, %c0_4] : memref<1x32xf32, #tpu.memory_space<vmem>>, vector<1x32xf32>
    %4 = vector.broadcast %3 : vector<1x32xf32> to vector<288x32xf32>
    %5 = arith.mulf %2, %4 : vector<288x32xf32>
    %c0_5 = arith.constant 0 : index
    %c0_6 = arith.constant 0 : index
    %6 = vector.load %arg4[%c0_5, %c0_6] : memref<1x32xf32, #tpu.memory_space<vmem>>, vector<1x32xf32>
    %7 = vector.broadcast %6 : vector<1x32xf32> to vector<288x32xf32>
    %8 = arith.addf %5, %7 : vector<288x32xf32>
    %cst_7 = arith.constant 0.000000e+00 : f32
    %9 = vector.broadcast %cst_7 : f32 to vector<288x32xf32>
    %10 = arith.maximumf %8, %9 : vector<288x32xf32>
    %c0_8 = arith.constant 0 : index
    %c0_9 = arith.constant 0 : index
    %11 = vector.load %arg5[%c0_8, %c0_9] : memref<8x288xf32, #tpu.memory_space<vmem>>, vector<8x288xf32>
    %cst_10 = arith.constant dense<0.000000e+00> : vector<8x32xf32>
    %12 = tpu.matmul %11, %10, %cst_10 {dimension_numbers = #tpu.dot_dimension_numbers<[1], [0], [0], [1], [0, 0, 1, 1], [], []>} : vector<8x288xf32>, vector<288x32xf32>, vector<8x32xf32> -> vector<8x32xf32>
    %cst_11 = arith.constant 0.027777778 : f32
    %13 = vector.broadcast %cst_11 : f32 to vector<8x32xf32>
    %14 = arith.mulf %12, %13 : vector<8x32xf32>
    %c0_12 = arith.constant 0 : index
    %c0_13 = arith.constant 0 : index
    %15 = vector.load %arg6[%c0_12, %c0_13] : memref<32x384xf32, #tpu.memory_space<vmem>>, vector<32x384xf32>
    %cst_14 = arith.constant dense<0.000000e+00> : vector<8x384xf32>
    %16 = tpu.matmul %14, %15, %cst_14 {dimension_numbers = #tpu.dot_dimension_numbers<[1], [0], [0], [1], [0, 0, 1, 1], [], []>} : vector<8x32xf32>, vector<32x384xf32>, vector<8x384xf32> -> vector<8x384xf32>
    %c0_15 = arith.constant 0 : index
    %c0_16 = arith.constant 0 : index
    %17 = vector.load %arg7[%c0_15, %c0_16] : memref<1x384xf32, #tpu.memory_space<vmem>>, vector<1x384xf32>
    %18 = vector.broadcast %17 : vector<1x384xf32> to vector<8x384xf32>
    %19 = arith.addf %16, %18 : vector<8x384xf32>
    %cst_17 = arith.constant 0.000000e+00 : f32
    %20 = vector.broadcast %cst_17 : f32 to vector<8x384xf32>
    %21 = arith.cmpf ogt, %19, %20 : vector<8x384xf32>
    %cst_18 = arith.constant 1.000000e-01 : f32
    %22 = vector.broadcast %cst_18 : f32 to vector<8x384xf32>
    %23 = arith.mulf %22, %19 : vector<8x384xf32>
    %24 = arith.select %21, %19, %23 : vector<8x384xi1>, vector<8x384xf32>
    %c0_19 = arith.constant 0 : index
    %c0_20 = arith.constant 0 : index
    %25 = vector.load %arg8[%c0_19, %c0_20] : memref<8x384xf32, #tpu.memory_space<vmem>>, vector<8x384xf32>
    %cst_21 = arith.constant dense<0.000000e+00> : vector<8x8xf32>
    %26 = tpu.matmul %25, %24, %cst_21 {dimension_numbers = #tpu.dot_dimension_numbers<[1], [1], [0], [0], [0, 0, 1, 0], [], []>} : vector<8x384xf32>, vector<8x384xf32>, vector<8x8xf32> -> vector<8x8xf32>
    %c0_22 = arith.constant 0 : index
    %c0_23 = arith.constant 0 : index
    %27 = vector.load %arg9[%c0_22, %c0_23] : memref<1x1xf32, #tpu.memory_space<vmem>>, vector<1x1xf32>
    %28 = vector.broadcast %27 : vector<1x1xf32> to vector<8x8xf32>
    %29 = arith.addf %26, %28 : vector<8x8xf32>
    %cst_24 = arith.constant 0.000000e+00 : f32
    %30 = vector.broadcast %cst_24 : f32 to vector<8x8xf32>
    %31 = arith.subf %30, %29 : vector<8x8xf32>
    %32 = math.exp %31 : vector<8x8xf32>
    %cst_25 = arith.constant 1.000000e+00 : f32
    %33 = vector.broadcast %cst_25 : f32 to vector<8x8xf32>
    %34 = arith.addf %33, %32 : vector<8x8xf32>
    %cst_26 = arith.constant 1.000000e+00 : f32
    %35 = vector.broadcast %cst_26 : f32 to vector<8x8xf32>
    %36 = arith.divf %35, %34 : vector<8x8xf32>
    %c0_27 = arith.constant 0 : index
    %c0_28 = arith.constant 0 : index
    %37 = vector.load %arg10[%c0_27, %c0_28] : memref<8x8xf32, #tpu.memory_space<vmem>>, vector<8x8xf32>
    tpu.vector_store %arg10[%c0_27, %c0_28], %36 {strides = array<i32>} : memref<8x8xf32, #tpu.memory_space<vmem>>, vector<8x8xf32>,
    return
  }
  func.func @transform_0(%arg0: i32) -> (i32, i32) {
    %c0_i32 = arith.constant 0 : i32
    %c0_i32_0 = arith.constant 0 : i32
    return %arg0, %c0_i32 : i32, i32
  }
  func.func @transform_1(%arg0: i32) -> (i32, i32) {
    %c0_i32 = arith.constant 0 : i32
    %c0_i32_0 = arith.constant 0 : i32
    %c0_i32_1 = arith.constant 0 : i32
    return %c0_i32, %c0_i32_0 : i32, i32
  }
  func.func @transform_2(%arg0: i32) -> (i32, i32) {
    %c0_i32 = arith.constant 0 : i32
    %c0_i32_0 = arith.constant 0 : i32
    %c0_i32_1 = arith.constant 0 : i32
    return %c0_i32, %c0_i32_0 : i32, i32
  }
  func.func @transform_3(%arg0: i32) -> (i32, i32) {
    %c0_i32 = arith.constant 0 : i32
    %c0_i32_0 = arith.constant 0 : i32
    %c0_i32_1 = arith.constant 0 : i32
    return %c0_i32, %c0_i32_0 : i32, i32
  }
  func.func @transform_4(%arg0: i32) -> (i32, i32) {
    %c0_i32 = arith.constant 0 : i32
    %c0_i32_0 = arith.constant 0 : i32
    %c0_i32_1 = arith.constant 0 : i32
    return %c0_i32, %c0_i32_0 : i32, i32
  }
  func.func @transform_5(%arg0: i32) -> (i32, i32) {
    %c0_i32 = arith.constant 0 : i32
    %c0_i32_0 = arith.constant 0 : i32
    %c0_i32_1 = arith.constant 0 : i32
    return %c0_i32, %c0_i32_0 : i32, i32
  }
  func.func @transform_6(%arg0: i32) -> (i32, i32) {
    %c0_i32 = arith.constant 0 : i32
    %c0_i32_0 = arith.constant 0 : i32
    %c0_i32_1 = arith.constant 0 : i32
    return %c0_i32, %c0_i32_0 : i32, i32
  }
  func.func @transform_7(%arg0: i32) -> (i32, i32) {
    %c0_i32 = arith.constant 0 : i32
    %c0_i32_0 = arith.constant 0 : i32
    %c0_i32_1 = arith.constant 0 : i32
    return %c0_i32, %c0_i32_0 : i32, i32
  }
  func.func @transform_8(%arg0: i32) -> (i32, i32) {
    %c0_i32 = arith.constant 0 : i32
    %c0_i32_0 = arith.constant 0 : i32
    %c0_i32_1 = arith.constant 0 : i32
    return %c0_i32, %c0_i32_0 : i32, i32
  }
  func.func @transform_9(%arg0: i32) -> (i32, i32) {
    %c0_i32 = arith.constant 0 : i32
    %c0_i32_0 = arith.constant 0 : i32
    return %arg0, %c0_i32 : i32, i32
  }
}

</mosaic_0001>

<llo_original>
// kernel: relation_net_forward.1
$region0: #{relation_net_forward.1}
  #allocation0 [shape = 'u32[]', space=smem, size = 0x4, offset = 0x4, fixed_abs, tag = 'smem constant byte address 0x4 - core index']
  #allocation1 [shape = 'u32[144,128]{1,0:T(1,128)}', space=vmem, size = 0x12000, scoped, tag = 'internal scratch']
  #allocation2 [shape = 'f32[1,1]{1,0:T(1,128)S(1)}', space=vmem, size = 0x200, scoped, tag = 'scoped memory for relation_net_forward.1']
  %s0 = inlined_call_operand.vmem [shape: bf16[576,576], index: 0, kind: input, shape index: {}]
  %s1 = inlined_call_operand.vmem [shape: bf16[576,32], index: 1, kind: input, shape index: {}]
  %s2 = inlined_call_operand.vmem [shape: f32[1,32], index: 2, kind: input, shape index: {}]
  %s3 = inlined_call_operand.vmem [shape: f32[1,32], index: 3, kind: input, shape index: {}]
  %s4 = inlined_call_operand.vmem [shape: f32[8,288], index: 4, kind: input, shape index: {}]
  %s5 = inlined_call_operand.vmem [shape: f32[32,384], index: 5, kind: input, shape index: {}]
  %s6 = inlined_call_operand.vmem [shape: f32[1,384], index: 6, kind: input, shape index: {}]
  %s7 = inlined_call_operand.vmem [shape: f32[8,384], index: 7, kind: input, shape index: {}]
  %s8 = inlined_call_operand.<no memory space> [shape: f32[1,1], index: 8, kind: input, shape index: {}]
  %s9 = inlined_call_operand.vmem [shape: f32[16,8], index: 9, kind: output, shape index: {}]
  %s10 = sld [smem:[#allocation0]]
  $region69: #{relation_net_forward.1} parent=0
    _
  %s12 = ssub.s32 1, %s10
  %s13 = scalar_select 0, %s12, %s10
  %v14 = vstv %s8
  %15 = vst [vmem:[#allocation2] sm:$0x1] %v14
  loop: start=0, step=1, limit=4
  $region2: #{relation_net_forward.1} parent=0 // loop_pre_header
    _
  $region3: #{relation_net_forward.1} parent=0 // loop_header
    %s17 = sphi 0, %s21
    %p18 = scmp.ge.s32.totalorder %s17, 4
    %s27 = sphi 0, %s29
    %s30 = sphi 0, %s27
    %s31 = sphi 0, %s30
    %s47 = sphi 0, %s31
    %s51 = sphi 0, %s51
    %s53 = sphi 0, %s51
    %s54 = sphi 0, %s53
    %s68 = sphi 0, %s54
    %s72 = sphi 0, %s72
    %s74 = sphi 0, %s72
    %s75 = sphi 0, %s74
    %s89 = sphi 0, %s75
    %s93 = sphi 0, %s93
    %s95 = sphi 0, %s93
    %s96 = sphi 0, %s95
    %s110 = sphi 0, %s96
    %s114 = sphi 0, %s114
    %s116 = sphi 0, %s114
    %s117 = sphi 0, %s116
    %s131 = sphi 0, %s117
    %s135 = sphi 0, %s135
    %s137 = sphi 0, %s135
    %s138 = sphi 0, %s137
    %s152 = sphi 0, %s138
    %s156 = sphi 0, %s156
    %s158 = sphi 0, %s156
    %s159 = sphi 0, %s158
    %s173 = sphi 0, %s159
    %s177 = sphi 0, %s177
    %s179 = sphi 0, %s177
    %s180 = sphi 0, %s179
    %s194 = sphi 0, %s180
    %s198 = sphi 0, %s198
    %s200 = sphi 0, %s198
    %s201 = sphi 0, %s200
    %s215 = sphi 0, %s201
    %s221 = sphi 0, %s223
    %s224 = sphi 0, %s221
    %s225 = sphi 0, %s224
    %s241 = sphi 0, %s225
  $region4: #{relation_net_forward.1} parent=0 // loop_header_branch
    %20 = sbr.rel (%p18) target = $region8
  $region5: #{relation_net_forward.1} parent=0 // loop_body
    %s22 = ssub.s32 %s17, 1
    %s23 = ssub.s32 %s17, 2
    %s24 = sadd.s32 %s17, 1
    %s25 = ssub.s32 %s17, %s24
    %p26 = scmp.eq.s32.totalorder %s25, 0
    %s28 = sadd.s32 %s27, 1
    %s29 = scalar_select %p26, %s27, %s28
    %p32 = pneg %p26
    %p33 = scmp.eq.s32.totalorder %s17, 1
    %p34 = por %p32, %p33
    %p35 = scmp.ne.s32.totalorder %s27, %s30
    %p36 = scmp.eq.s32.totalorder %s17, 0
    %p37 = por %p35, %p36
    %p38 = scmp.ne.s32.totalorder %s27, %s30
    %p39 = scmp.eq.s32.totalorder %s22, 1
    %p40 = por %p38, %p39
    %p41 = scmp.ne.s32.totalorder %s30, %s31
    %p42 = scmp.eq.s32.totalorder %s22, 0
    %p43 = por %p41, %p42
    %p44 = scmp.ne.s32.totalorder %s30, %s31
    %p45 = scmp.eq.s32.totalorder %s23, 1
    %p46 = por %p44, %p45
    %p48 = scmp.ne.s32.totalorder %s31, %s47
    %p49 = scmp.eq.s32.totalorder %s23, 0
    %p50 = por %p48, %p49
    %s52 = sadd.s32 %s51, 1
    %p55 = scmp.eq.s32.totalorder %s17, 1
    %p56 = scmp.ne.s32.totalorder %s51, %s53
    %p57 = scmp.eq.s32.totalorder %s17, 0
    %p58 = por %p56, %p57
    %p59 = scmp.ne.s32.totalorder %s51, %s53
    %p60 = scmp.eq.s32.totalorder %s22, 1
    %p61 = por %p59, %p60
    %p62 = scmp.ne.s32.totalorder %s53, %s54
    %p63 = scmp.eq.s32.totalorder %s22, 0
    %p64 = por %p62, %p63
    %p65 = scmp.ne.s32.totalorder %s53, %s54
    %p66 = scmp.eq.s32.totalorder %s23, 1
    %p67 = por %p65, %p66
    %p69 = scmp.ne.s32.totalorder %s54, %s68
    %p70 = scmp.eq.s32.totalorder %s23, 0
    %p71 = por %p69, %p70
    %s73 = sadd.s32 %s72, 1
    %p76 = scmp.eq.s32.totalorder %s17, 1
    %p77 = scmp.ne.s32.totalorder %s72, %s74
    %p78 = scmp.eq.s32.totalorder %s17, 0
    %p79 = por %p77, %p78
    %p80 = scmp.ne.s32.totalorder %s72, %s74
    %p81 = scmp.eq.s32.totalorder %s22, 1
    %p82 = por %p80, %p81
    %p83 = scmp.ne.s32.totalorder %s74, %s75
    %p84 = scmp.eq.s32.totalorder %s22, 0
    %p85 = por %p83, %p84
    %p86 = scmp.ne.s32.totalorder %s74, %s75
    %p87 = scmp.eq.s32.totalorder %s23, 1
    %p88 = por %p86, %p87
    %p90 = scmp.ne.s32.totalorder %s75, %s89
    %p91 = scmp.eq.s32.totalorder %s23, 0
    %p92 = por %p90, %p91
    %s94 = sadd.s32 %s93, 1
    %p97 = scmp.eq.s32.totalorder %s17, 1
    %p98 = scmp.ne.s32.totalorder %s93, %s95
    %p99 = scmp.eq.s32.totalorder %s17, 0
    %p100 = por %p98, %p99
    %p101 = scmp.ne.s32.totalorder %s93, %s95
    %p102 = scmp.eq.s32.totalorder %s22, 1
    %p103 = por %p101, %p102
    %p104 = scmp.ne.s32.totalorder %s95, %s96
    %p105 = scmp.eq.s32.totalorder %s22, 0
    %p106 = por %p104, %p105
    %p107 = scmp.ne.s32.totalorder %s95, %s96
    %p108 = scmp.eq.s32.totalorder %s23, 1
    %p109 = por %p107, %p108
    %p111 = scmp.ne.s32.totalorder %s96, %s110
    %p112 = scmp.eq.s32.totalorder %s23, 0
    %p113 = por %p111, %p112
    %s115 = sadd.s32 %s114, 1
    %p118 = scmp.eq.s32.totalorder %s17, 1
    %p119 = scmp.ne.s32.totalorder %s114, %s116
    %p120 = scmp.eq.s32.totalorder %s17, 0
    %p121 = por %p119, %p120
    %p122 = scmp.ne.s32.totalorder %s114, %s116
    %p123 = scmp.eq.s32.totalorder %s22, 1
    %p124 = por %p122, %p123
    %p125 = scmp.ne.s32.totalorder %s116, %s117
    %p126 = scmp.eq.s32.totalorder %s22, 0
    %p127 = por %p125, %p126
    %p128 = scmp.ne.s32.totalorder %s116, %s117
    %p129 = scmp.eq.s32.totalorder %s23, 1
    %p130 = por %p128, %p129
    %p132 = scmp.ne.s32.totalorder %s117, %s131
    %p133 = scmp.eq.s32.totalorder %s23, 0
    %p134 = por %p132, %p133
    %s136 = sadd.s32 %s135, 1
    %p139 = scmp.eq.s32.totalorder %s17, 1
    %p140 = scmp.ne.s32.totalorder %s135, %s137
    %p141 = scmp.eq.s32.totalorder %s17, 0
    %p142 = por %p140, %p141
    %p143 = scmp.ne.s32.totalorder %s135, %s137
    %p144 = scmp.eq.s32.totalorder %s22, 1
    %p145 = por %p143, %p144
    %p146 = scmp.ne.s32.totalorder %s137, %s138
    %p147 = scmp.eq.s32.totalorder %s22, 0
    %p148 = por %p146, %p147
    %p149 = scmp.ne.s32.totalorder %s137, %s138
    %p150 = scmp.eq.s32.totalorder %s23, 1
    %p151 = por %p149, %p150
    %p153 = scmp.ne.s32.totalorder %s138, %s152
    %p154 = scmp.eq.s32.totalorder %s23, 0
    %p155 = por %p153, %p154
    %s157 = sadd.s32 %s156, 1
    %p160 = scmp.eq.s32.totalorder %s17, 1
    %p161 = scmp.ne.s32.totalorder %s156, %s158
    %p162 = scmp.eq.s32.totalorder %s17, 0
    %p163 = por %p161, %p162
    %p164 = scmp.ne.s32.totalorder %s156, %s158
    %p165 = scmp.eq.s32.totalorder %s22, 1
    %p166 = por %p164, %p165
    %p167 = scmp.ne.s32.totalorder %s158, %s159
    %p168 = scmp.eq.s32.totalorder %s22, 0
    %p169 = por %p167, %p168
    %p170 = scmp.ne.s32.totalorder %s158, %s159
    %p171 = scmp.eq.s32.totalorder %s23, 1
    %p172 = por %p170, %p171
    %p174 = scmp.ne.s32.totalorder %s159, %s173
    %p175 = scmp.eq.s32.totalorder %s23, 0
    %p176 = por %p174, %p175
    %s178 = sadd.s32 %s177, 1
    %p181 = scmp.eq.s32.totalorder %s17, 1
    %p182 = scmp.ne.s32.totalorder %s177, %s179
    %p183 = scmp.eq.s32.totalorder %s17, 0
    %p184 = por %p182, %p183
    %p185 = scmp.ne.s32.totalorder %s177, %s179
    %p186 = scmp.eq.s32.totalorder %s22, 1
    %p187 = por %p185, %p186
    %p188 = scmp.ne.s32.totalorder %s179, %s180
    %p189 = scmp.eq.s32.totalorder %s22, 0
    %p190 = por %p188, %p189
    %p191 = scmp.ne.s32.totalorder %s179, %s180
    %p192 = scmp.eq.s32.totalorder %s23, 1
    %p193 = por %p191, %p192
    %p195 = scmp.ne.s32.totalorder %s180, %s194
    %p196 = scmp.eq.s32.totalorder %s23, 0
    %p197 = por %p195, %p196
    %s199 = sadd.s32 %s198, 1
    %p202 = scmp.eq.s32.totalorder %s17, 1
    %p203 = scmp.ne.s32.totalorder %s198, %s200
    %p204 = scmp.eq.s32.totalorder %s17, 0
    %p205 = por %p203, %p204
    %p206 = scmp.ne.s32.totalorder %s198, %s200
    %p207 = scmp.eq.s32.totalorder %s22, 1
    %p208 = por %p206, %p207
    %p209 = scmp.ne.s32.totalorder %s200, %s201
    %p210 = scmp.eq.s32.totalorder %s22, 0
    %p211 = por %p209, %p210
    %p212 = scmp.ne.s32.totalorder %s200, %s201
    %p213 = scmp.eq.s32.totalorder %s23, 1
    %p214 = por %p212, %p213
    %p216 = scmp.ne.s32.totalorder %s201, %s215
    %p217 = scmp.eq.s32.totalorder %s23, 0
    %p218 = por %p216, %p217
    %s219 = ssub.s32 %s17, %s24
    %p220 = scmp.eq.s32.totalorder %s219, 0
    %s222 = sadd.s32 %s221, 1
    %s223 = scalar_select %p220, %s221, %s222
    %p226 = pneg %p220
    %p227 = scmp.eq.s32.totalorder %s17, 1
    %p228 = por %p226, %p227
    %p229 = scmp.ne.s32.totalorder %s221, %s224
    %p230 = scmp.eq.s32.totalorder %s17, 0
    %p231 = por %p229, %p230
    %p232 = scmp.ne.s32.totalorder %s221, %s224
    %p233 = scmp.eq.s32.totalorder %s22, 1
    %p234 = por %p232, %p233
    %p235 = scmp.ne.s32.totalorder %s224, %s225
    %p236 = scmp.eq.s32.totalorder %s22, 0
    %p237 = por %p235, %p236
    %p238 = scmp.ne.s32.totalorder %s224, %s225
    %p239 = scmp.eq.s32.totalorder %s23, 1
    %p240 = por %p238, %p239
    %p242 = scmp.ne.s32.totalorder %s225, %s241
    %p243 = scmp.eq.s32.totalorder %s23, 0
    %p244 = por %p242, %p243
    %p245 = scmp.le.s32.totalorder 1, %s17
    %p246 = scmp.lt.s32.totalorder %s17, 3
    %p247 = pnand %p245, %p246
    %p248 = pneg %p247
    // Predicated region
    $region9: #{relation_net_forward.1} parent=5 // pred_check
      _
    $region10: #{relation_net_forward.1} parent=5 // pred_check_branch
      %250 = sbr.rel (%p247) target = $region12
    $region11: #{relation_net_forward.1} parent=5 // pred_region
      %s251 = ssub.s32 %s17, 1
      // Predicated region
      $region13: #{relation_net_forward.1} parent=11 // pred_check
        %p252 = pneg %p64
      $region14: #{relation_net_forward.1} parent=11 // pred_check_branch
        %254 = sbr.rel (%p252) target = $region16
      $region15: #{relation_net_forward.1} parent=11 // pred_region
        _
      $region16: #{relation_net_forward.1} parent=11 // pred_fallthru
        _
      // Predicated region
      $region17: #{relation_net_forward.1} parent=11 // pred_check
        %p255 = pneg %p85
      $region18: #{relation_net_forward.1} parent=11 // pred_check_branch
        %257 = sbr.rel (%p255) target = $region20
      $region19: #{relation_net_forward.1} parent=11 // pred_region
        _
      $region20: #{relation_net_forward.1} parent=11 // pred_fallthru
        _
      // Predicated region
      $region21: #{relation_net_forward.1} parent=11 // pred_check
        %p258 = pneg %p106
      $region22: #{relation_net_forward.1} parent=11 // pred_check_branch
        %260 = sbr.rel (%p258) target = $region24
      $region23: #{relation_net_forward.1} parent=11 // pred_region
        _
      $region24: #{relation_net_forward.1} parent=11 // pred_fallthru
        _
      // Predicated region
      $region25: #{relation_net_forward.1} parent=11 // pred_check
        %p261 = pneg %p127
      $region26: #{relation_net_forward.1} parent=11 // pred_check_branch
        %263 = sbr.rel (%p261) target = $region28
      $region27: #{relation_net_forward.1} parent=11 // pred_region
        _
      $region28: #{relation_net_forward.1} parent=11 // pred_fallthru
        _
      // Predicated region
      $region29: #{relation_net_forward.1} parent=11 // pred_check
        %p264 = pneg %p148
      $region30: #{relation_net_forward.1} parent=11 // pred_check_branch
        %266 = sbr.rel (%p264) target = $region32
      $region31: #{relation_net_forward.1} parent=11 // pred_region
        _
      $region32: #{relation_net_forward.1} parent=11 // pred_fallthru
        _
      // Predicated region
      $region33: #{relation_net_forward.1} parent=11 // pred_check
        %p267 = pneg %p169
      $region34: #{relation_net_forward.1} parent=11 // pred_check_branch
        %269 = sbr.rel (%p267) target = $region36
      $region35: #{relation_net_forward.1} parent=11 // pred_region
        _
      $region36: #{relation_net_forward.1} parent=11 // pred_fallthru
        _
      // Predicated region
      $region37: #{relation_net_forward.1} parent=11 // pred_check
        %p270 = pneg %p190
      $region38: #{relation_net_forward.1} parent=11 // pred_check_branch
        %272 = sbr.rel (%p270) target = $region40
      $region39: #{relation_net_forward.1} parent=11 // pred_region
        _
      $region40: #{relation_net_forward.1} parent=11 // pred_fallthru
        _
      // Predicated region
      $region41: #{relation_net_forward.1} parent=11 // pred_check
        %p273 = pneg %p211
      $region42: #{relation_net_forward.1} parent=11 // pred_check_branch
        %275 = sbr.rel (%p273) target = $region44
      $region43: #{relation_net_forward.1} parent=11 // pred_region
        _
      $region44: #{relation_net_forward.1} parent=11 // pred_fallthru
        _
    $region12: #{relation_net_forward.1} parent=5 // pred_fallthru
      _
    %p276 = scmp.lt.s32.totalorder %s17, 2
    // Predicated region
    $region45: #{relation_net_forward.1} parent=5 // pred_check
      %p277 = pneg %p276
    $region46: #{relation_net_forward.1} parent=5 // pred_check_branch
      %279 = sbr.rel (%p277) target = $region48
    $region47: #{relation_net_forward.1} parent=5 // pred_region
      // Predicated region
      $region49: #{relation_net_forward.1} parent=47 // pred_check
        %p280 = pneg %p37
      $region50: #{relation_net_forward.1} parent=47 // pred_check_branch
        %282 = sbr.rel (%p280) target = $region52
      $region51: #{relation_net_forward.1} parent=47 // pred_region
        %s283 = smul.u32 36, %s17
        %p284 = scmp.lt.s32.totalorder %s283, 71
        %s285 = scalar_select %p284, %s283, 71
        %s286 = smul.addr %s285, 5
        %s287 = smul.addr %s286, 4
        %s288 = scalar_lea.vmem %s0, %s287
        %s289 = smul.u32 36, %s17
      $region52: #{relation_net_forward.1} parent=47 // pred_fallthru
        _
    $region48: #{relation_net_forward.1} parent=5 // pred_fallthru
      _
    %p290 = scmp.le.s32.totalorder 1, %s17
    %p291 = scmp.lt.s32.totalorder %s17, 3
    %p292 = pnand %p290, %p291
    %p293 = pneg %p292
    // Predicated region
    $region53: #{relation_net_forward.1} parent=5 // pred_check
      _
    $region54: #{relation_net_forward.1} parent=5 // pred_check_branch
      %295 = sbr.rel (%p292) target = $region56
    $region55: #{relation_net_forward.1} parent=5 // pred_region
      %s296 = ssub.s32 %s17, 1
      %s297 = smul.u32 36, %s22
      %p298 = scmp.lt.s32.totalorder %s297, 71
      %s299 = scalar_select %p298, %s297, 71
      %s300 = smul.addr %s299, 5
      %s301 = smul.addr %s300, 4
      %s302 = scalar_lea.vmem %s0, %s301
      %p303 = pneg %p43
      %p304 = pneg %p40
      %p305 = pneg %p64
      %p306 = pneg %p61
      %p307 = pneg %p85
      %p308 = pneg %p82
      %p309 = pneg %p106
      %p310 = pneg %p103
      %p311 = pneg %p127
      %p312 = pneg %p124
      %p313 = pneg %p148
      %p314 = pneg %p145
      %p315 = pneg %p169
      %p316 = pneg %p166
      %p317 = pneg %p190
      %p318 = pneg %p187
      %p319 = pneg %p211
      %p320 = pneg %p208
      %p321 = pneg %p237
      %p322 = pneg %p234
      %p323 = scmp.lt.s32.totalorder %s22, 1
      %s324 = scalar_select %p323, %s22, 1
      %s325 = smul.addr %s324, 8
      %s326 = scalar_lea.vmem %s9, %s325
      %s327 = smul.u32 36, %s22
      %p328 = scmp.lt.s32.totalorder %s327, 71
      %s329 = scalar_select %p328, %s327, 71
      %s330 = smul.addr %s329, 5
      %s331 = smul.addr %s330, 4
      %s332 = scalar_lea.vmem %s0, %s331
      %s333 = smul.u32 36, %s22
      %p334 = scmp.lt.s32.totalorder %s22, 1
      %s335 = scalar_select %p334, %s22, 1
      %s336 = smul.addr %s335, 8
      %s337 = scalar_lea.vmem %s9, %s336
      %v339 = vld [vmem:[%s332] sm:$0xff]
      %v340 = vld [vmem:[%s332 + $0x8] sm:$0xff]
      %v341 = vld [vmem:[%s332 + $0x10] sm:$0xf]
      %v342 = vld [vmem:[%s332 + $0x14] sm:$0xff]
      %v343 = vld [vmem:[%s332 + $0x1c] sm:$0xff]
      %v344 = vld [vmem:[%s332 + $0x24] sm:$0xf]
      %v345 = vld [vmem:[%s332 + $0x28] sm:$0xff]
      %v346 = vld [vmem:[%s332 + $0x30] sm:$0xff]
      %v347 = vld [vmem:[%s332 + $0x38] sm:$0xf]
      %v348 = vld [vmem:[%s332 + $0x3c] sm:$0xff]
      %v349 = vld [vmem:[%s332 + $0x44] sm:$0xff]
      %v350 = vld [vmem:[%s332 + $0x4c] sm:$0xf]
      %v351 = vld [vmem:[%s332 + $0x50] sm:$0xff]
      %v352 = vld [vmem:[%s332 + $0x58] sm:$0xff]
      %v353 = vld [vmem:[%s332 + $0x60] sm:$0xf]
      %v354 = vld [vmem:[%s332 + $0x64] sm:$0xff]
      %v355 = vld [vmem:[%s332 + $0x6c] sm:$0xff]
      %v356 = vld [vmem:[%s332 + $0x74] sm:$0xf]
      %v357 = vld [vmem:[%s332 + $0x78] sm:$0xff]
      %v358 = vld [vmem:[%s332 + $0x80] sm:$0xff]
      %v359 = vld [vmem:[%s332 + $0x88] sm:$0xf]
      %v360 = vld [vmem:[%s332 + $0x8c] sm:$0xff]
      %v361 = vld [vmem:[%s332 + $0x94] sm:$0xff]
      %v362 = vld [vmem:[%s332 + $0x9c] sm:$0xf]
      %v363 = vld [vmem:[%s332 + $0xa0] sm:$0xff]
      %v364 = vld [vmem:[%s332 + $0xa8] sm:$0xff]
      %v365 = vld [vmem:[%s332 + $0xb0] sm:$0xf]
      %v366 = vld [vmem:[%s332 + $0xb4] sm:$0xff]
      %v367 = vld [vmem:[%s332 + $0xbc] sm:$0xff]
      %v368 = vld [vmem:[%s332 + $0xc4] sm:$0xf]
      %v369 = vld [vmem:[%s332 + $0xc8] sm:$0xff]
      %v370 = vld [vmem:[%s332 + $0xd0] sm:$0xff]
      %v371 = vld [vmem:[%s332 + $0xd8] sm:$0xf]
      %v372 = vld [vmem:[%s332 + $0xdc] sm:$0xff]
      %v373 = vld [vmem:[%s332 + $0xe4] sm:$0xff]
      %v374 = vld [vmem:[%s332 + $0xec] sm:$0xf]
      %v375 = vld [vmem:[%s332 + $0xf0] sm:$0xff]
      %v376 = vld [vmem:[%s332 + $0xf8] sm:$0xff]
      %v377 = vld [vmem:[%s332 + $0x100] sm:$0xf]
      %v378 = vld [vmem:[%s332 + $0x104] sm:$0xff]
      %v379 = vld [vmem:[%s332 + $0x10c] sm:$0xff]
      %v380 = vld [vmem:[%s332 + $0x114] sm:$0xf]
      %v381 = vld [vmem:[%s332 + $0x118] sm:$0xff]
      %v382 = vld [vmem:[%s332 + $0x120] sm:$0xff]
      %v383 = vld [vmem:[%s332 + $0x128] sm:$0xf]
      %v384 = vld [vmem:[%s332 + $0x12c] sm:$0xff]
      %v385 = vld [vmem:[%s332 + $0x134] sm:$0xff]
      %v386 = vld [vmem:[%s332 + $0x13c] sm:$0xf]
      %v387 = vld [vmem:[%s332 + $0x140] sm:$0xff]
      %v388 = vld [vmem:[%s332 + $0x148] sm:$0xff]
      %v389 = vld [vmem:[%s332 + $0x150] sm:$0xf]
      %v390 = vld [vmem:[%s332 + $0x154] sm:$0xff]
      %v391 = vld [vmem:[%s332 + $0x15c] sm:$0xff]
      %v392 = vld [vmem:[%s332 + $0x164] sm:$0xf]
      %v393 = vld [vmem:[%s332 + $0x168] sm:$0xff]
      %v394 = vld [vmem:[%s332 + $0x170] sm:$0xff]
      %v395 = vld [vmem:[%s332 + $0x178] sm:$0xf]
      %v396 = vld [vmem:[%s332 + $0x17c] sm:$0xff]
      %v397 = vld [vmem:[%s332 + $0x184] sm:$0xff]
      %v398 = vld [vmem:[%s332 + $0x18c] sm:$0xf]
      %v399 = vld [vmem:[%s332 + $0x190] sm:$0xff]
      %v400 = vld [vmem:[%s332 + $0x198] sm:$0xff]
      %v401 = vld [vmem:[%s332 + $0x1a0] sm:$0xf]
      %v402 = vld [vmem:[%s332 + $0x1a4] sm:$0xff]
      %v403 = vld [vmem:[%s332 + $0x1ac] sm:$0xff]
      %v404 = vld [vmem:[%s332 + $0x1b4] sm:$0xf]
      %v405 = vld [vmem:[%s332 + $0x1b8] sm:$0xff]
      %v406 = vld [vmem:[%s332 + $0x1c0] sm:$0xff]
      %v407 = vld [vmem:[%s332 + $0x1c8] sm:$0xf]
      %v408 = vld [vmem:[%s332 + $0x1cc] sm:$0xff]
      %v409 = vld [vmem:[%s332 + $0x1d4] sm:$0xff]
      %v410 = vld [vmem:[%s332 + $0x1dc] sm:$0xf]
      %v411 = vld [vmem:[%s332 + $0x1e0] sm:$0xff]
      %v412 = vld [vmem:[%s332 + $0x1e8] sm:$0xff]
      %v413 = vld [vmem:[%s332 + $0x1f0] sm:$0xf]
      %v414 = vld [vmem:[%s332 + $0x1f4] sm:$0xff]
      %v415 = vld [vmem:[%s332 + $0x1fc] sm:$0xff]
      %v416 = vld [vmem:[%s332 + $0x204] sm:$0xf]
      %v417 = vld [vmem:[%s332 + $0x208] sm:$0xff]
      %v418 = vld [vmem:[%s332 + $0x210] sm:$0xff]
      %v419 = vld [vmem:[%s332 + $0x218] sm:$0xf]
      %v420 = vld [vmem:[%s332 + $0x21c] sm:$0xff]
      %v421 = vld [vmem:[%s332 + $0x224] sm:$0xff]
      %v422 = vld [vmem:[%s332 + $0x22c] sm:$0xf]
      %v423 = vld [vmem:[%s332 + $0x230] sm:$0xff]
      %v424 = vld [vmem:[%s332 + $0x238] sm:$0xff]
      %v425 = vld [vmem:[%s332 + $0x240] sm:$0xf]
      %v426 = vld [vmem:[%s332 + $0x244] sm:$0xff]
      %v427 = vld [vmem:[%s332 + $0x24c] sm:$0xff]
      %v428 = vld [vmem:[%s332 + $0x254] sm:$0xf]
      %v429 = vld [vmem:[%s332 + $0x258] sm:$0xff]
      %v430 = vld [vmem:[%s332 + $0x260] sm:$0xff]
      %v431 = vld [vmem:[%s332 + $0x268] sm:$0xf]
      %v432 = vld [vmem:[%s332 + $0x26c] sm:$0xff]
      %v433 = vld [vmem:[%s332 + $0x274] sm:$0xff]
      %v434 = vld [vmem:[%s332 + $0x27c] sm:$0xf]
      %v435 = vld [vmem:[%s332 + $0x280] sm:$0xff]
      %v436 = vld [vmem:[%s332 + $0x288] sm:$0xff]
      %v437 = vld [vmem:[%s332 + $0x290] sm:$0xf]
      %v438 = vld [vmem:[%s332 + $0x294] sm:$0xff]
      %v439 = vld [vmem:[%s332 + $0x29c] sm:$0xff]
      %v440 = vld [vmem:[%s332 + $0x2a4] sm:$0xf]
      %v441 = vld [vmem:[%s332 + $0x2a8] sm:$0xff]
      %v442 = vld [vmem:[%s332 + $0x2b0] sm:$0xff]
      %v443 = vld [vmem:[%s332 + $0x2b8] sm:$0xf]
      %v444 = vld [vmem:[%s332 + $0x2bc] sm:$0xff]
      %v445 = vld [vmem:[%s332 + $0x2c4] sm:$0xff]
      %v446 = vld [vmem:[%s332 + $0x2cc] sm:$0xf]
      %v447 = vld [vmem:[%s1] sm:$0xf]
      %v448 = vld [vmem:[%s1 + $0x4] sm:$0xf]
      %v449 = vld [vmem:[%s1 + $0x8] sm:$0xf]
      %v450 = vld [vmem:[%s1 + $0xc] sm:$0xf]
      %v451 = vld [vmem:[%s1 + $0x10] sm:$0xf]
      %v452 = vld [vmem:[%s1 + $0x14] sm:$0xf]
      %v453 = vld [vmem:[%s1 + $0x18] sm:$0xf]
      %v454 = vld [vmem:[%s1 + $0x1c] sm:$0xf]
      %v455 = vld [vmem:[%s1 + $0x20] sm:$0xf]
      %v456 = vld [vmem:[%s1 + $0x24] sm:$0xf]
      %v457 = vld [vmem:[%s1 + $0x28] sm:$0xf]
      %v458 = vld [vmem:[%s1 + $0x2c] sm:$0xf]
      %v459 = vld [vmem:[%s1 + $0x30] sm:$0xf]
      %v460 = vld [vmem:[%s1 + $0x34] sm:$0xf]
      %v461 = vld [vmem:[%s1 + $0x38] sm:$0xf]
      %v462 = vld [vmem:[%s1 + $0x3c] sm:$0xf]
      %v463 = vld [vmem:[%s1 + $0x40] sm:$0xf]
      %v464 = vld [vmem:[%s1 + $0x44] sm:$0xf]
      %v465 = vld [vmem:[%s1 + $0x48] sm:$0xf]
      %v466 = vld [vmem:[%s1 + $0x4c] sm:$0xf]
      %v467 = vld [vmem:[%s1 + $0x50] sm:$0xf]
      %v468 = vld [vmem:[%s1 + $0x54] sm:$0xf]
      %v469 = vld [vmem:[%s1 + $0x58] sm:$0xf]
      %v470 = vld [vmem:[%s1 + $0x5c] sm:$0xf]
      %v471 = vld [vmem:[%s1 + $0x60] sm:$0xf]
      %v472 = vld [vmem:[%s1 + $0x64] sm:$0xf]
      %v473 = vld [vmem:[%s1 + $0x68] sm:$0xf]
      %v474 = vld [vmem:[%s1 + $0x6c] sm:$0xf]
      %v475 = vld [vmem:[%s1 + $0x70] sm:$0xf]
      %v476 = vld [vmem:[%s1 + $0x74] sm:$0xf]
      %v477 = vld [vmem:[%s1 + $0x78] sm:$0xf]
      %v478 = vld [vmem:[%s1 + $0x7c] sm:$0xf]
      %v479 = vld [vmem:[%s1 + $0x80] sm:$0xf]
      %v480 = vld [vmem:[%s1 + $0x84] sm:$0xf]
      %v481 = vld [vmem:[%s1 + $0x88] sm:$0xf]
      %v482 = vld [vmem:[%s1 + $0x8c] sm:$0xf]
      %v483 = vld [vmem:[%s1 + $0x90] sm:$0xf]
      %v484 = vld [vmem:[%s1 + $0x94] sm:$0xf]
      %v485 = vld [vmem:[%s1 + $0x98] sm:$0xf]
      %v486 = vld [vmem:[%s1 + $0x9c] sm:$0xf]
      %v487 = vld [vmem:[%s1 + $0xa0] sm:$0xf]
      %v488 = vld [vmem:[%s1 + $0xa4] sm:$0xf]
      %v489 = vld [vmem:[%s1 + $0xa8] sm:$0xf]
      %v490 = vld [vmem:[%s1 + $0xac] sm:$0xf]
      %v491 = vld [vmem:[%s1 + $0xb0] sm:$0xf]
      %v492 = vld [vmem:[%s1 + $0xb4] sm:$0xf]
      %v493 = vld [vmem:[%s1 + $0xb8] sm:$0xf]
      %v494 = vld [vmem:[%s1 + $0xbc] sm:$0xf]
      %v495 = vld [vmem:[%s1 + $0xc0] sm:$0xf]
      %v496 = vld [vmem:[%s1 + $0xc4] sm:$0xf]
      %v497 = vld [vmem:[%s1 + $0xc8] sm:$0xf]
      %v498 = vld [vmem:[%s1 + $0xcc] sm:$0xf]
      %v499 = vld [vmem:[%s1 + $0xd0] sm:$0xf]
      %v500 = vld [vmem:[%s1 + $0xd4] sm:$0xf]
      %v501 = vld [vmem:[%s1 + $0xd8] sm:$0xf]
      %v502 = vld [vmem:[%s1 + $0xdc] sm:$0xf]
      %v503 = vld [vmem:[%s1 + $0xe0] sm:$0xf]
      %v504 = vld [vmem:[%s1 + $0xe4] sm:$0xf]
      %v505 = vld [vmem:[%s1 + $0xe8] sm:$0xf]
      %v506 = vld [vmem:[%s1 + $0xec] sm:$0xf]
      %v507 = vld [vmem:[%s1 + $0xf0] sm:$0xf]
      %v508 = vld [vmem:[%s1 + $0xf4] sm:$0xf]
      %v509 = vld [vmem:[%s1 + $0xf8] sm:$0xf]
      %v510 = vld [vmem:[%s1 + $0xfc] sm:$0xf]
      %v511 = vld [vmem:[%s1 + $0x100] sm:$0xf]
      %v512 = vld [vmem:[%s1 + $0x104] sm:$0xf]
      %v513 = vld [vmem:[%s1 + $0x108] sm:$0xf]
      %v514 = vld [vmem:[%s1 + $0x10c] sm:$0xf]
      %v515 = vld [vmem:[%s1 + $0x110] sm:$0xf]
      %v516 = vld [vmem:[%s1 + $0x114] sm:$0xf]
      %v517 = vld [vmem:[%s1 + $0x118] sm:$0xf]
      %v518 = vld [vmem:[%s1 + $0x11c] sm:$0xf]
      %v627 = vunpack.c.l.b16 %v339
      %v628 = vunpack.c.h.b16 %v339
      %v629 = vunpack.c.l.b16 %v340
      %v630 = vunpack.c.h.b16 %v340
      %v631 = vunpack.c.l.b16 %v341
      %v632 = vunpack.c.l.b16 %v342
      %v633 = vunpack.c.h.b16 %v342
      %v634 = vunpack.c.l.b16 %v343
      %v635 = vunpack.c.h.b16 %v343
      %v636 = vunpack.c.l.b16 %v344
      %v637 = vunpack.c.l.b16 %v345
      %v638 = vunpack.c.h.b16 %v345
      %v639 = vunpack.c.l.b16 %v346
      %v640 = vunpack.c.h.b16 %v346
      %v641 = vunpack.c.l.b16 %v347
      %v642 = vunpack.c.l.b16 %v348
      %v643 = vunpack.c.h.b16 %v348
      %v644 = vunpack.c.l.b16 %v349
      %v645 = vunpack.c.h.b16 %v349
      %v646 = vunpack.c.l.b16 %v350
      %v647 = vunpack.c.l.b16 %v351
      %v648 = vunpack.c.h.b16 %v351
      %v649 = vunpack.c.l.b16 %v352
      %v650 = vunpack.c.h.b16 %v352
      %v651 = vunpack.c.l.b16 %v353
      %v652 = vunpack.c.l.b16 %v354
      %v653 = vunpack.c.h.b16 %v354
      %v654 = vunpack.c.l.b16 %v355
      %v655 = vunpack.c.h.b16 %v355
      %v656 = vunpack.c.l.b16 %v356
      %v657 = vunpack.c.l.b16 %v357
      %v658 = vunpack.c.h.b16 %v357
      %v659 = vunpack.c.l.b16 %v358
      %v660 = vunpack.c.h.b16 %v358
      %v661 = vunpack.c.l.b16 %v359
      %v662 = vunpack.c.l.b16 %v360
      %v663 = vunpack.c.h.b16 %v360
      %v664 = vunpack.c.l.b16 %v361
      %v665 = vunpack.c.h.b16 %v361
      %v666 = vunpack.c.l.b16 %v362
      %v667 = vunpack.c.l.b16 %v363
      %v668 = vunpack.c.h.b16 %v363
      %v669 = vunpack.c.l.b16 %v364
      %v670 = vunpack.c.h.b16 %v364
      %v671 = vunpack.c.l.b16 %v365
      %v672 = vunpack.c.l.b16 %v366
      %v673 = vunpack.c.h.b16 %v366
      %v674 = vunpack.c.l.b16 %v367
      %v675 = vunpack.c.h.b16 %v367
      %v676 = vunpack.c.l.b16 %v368
      %v677 = vunpack.c.l.b16 %v369
      %v678 = vunpack.c.h.b16 %v369
      %v679 = vunpack.c.l.b16 %v370
      %v680 = vunpack.c.h.b16 %v370
      %v681 = vunpack.c.l.b16 %v371
      %v682 = vunpack.c.l.b16 %v372
      %v683 = vunpack.c.h.b16 %v372
      %v684 = vunpack.c.l.b16 %v373
      %v685 = vunpack.c.h.b16 %v373
      %v686 = vunpack.c.l.b16 %v374
      %v687 = vunpack.c.l.b16 %v375
      %v688 = vunpack.c.h.b16 %v375
      %v689 = vunpack.c.l.b16 %v376
      %v690 = vunpack.c.h.b16 %v376
      %v691 = vunpack.c.l.b16 %v377
      %v692 = vunpack.c.l.b16 %v378
      %v693 = vunpack.c.h.b16 %v378
      %v694 = vunpack.c.l.b16 %v379
      %v695 = vunpack.c.h.b16 %v379
      %v696 = vunpack.c.l.b16 %v380
      %v697 = vunpack.c.l.b16 %v381
      %v698 = vunpack.c.h.b16 %v381
      %v699 = vunpack.c.l.b16 %v382
      %v700 = vunpack.c.h.b16 %v382
      %v701 = vunpack.c.l.b16 %v383
      %v702 = vunpack.c.l.b16 %v384
      %v703 = vunpack.c.h.b16 %v384
      %v704 = vunpack.c.l.b16 %v385
      %v705 = vunpack.c.h.b16 %v385
      %v706 = vunpack.c.l.b16 %v386
      %v707 = vunpack.c.l.b16 %v387
      %v708 = vunpack.c.h.b16 %v387
      %v709 = vunpack.c.l.b16 %v388
      %v710 = vunpack.c.h.b16 %v388
      %v711 = vunpack.c.l.b16 %v389
      %v712 = vunpack.c.l.b16 %v390
      %v713 = vunpack.c.h.b16 %v390
      %v714 = vunpack.c.l.b16 %v391
      %v715 = vunpack.c.h.b16 %v391
      %v716 = vunpack.c.l.b16 %v392
      %v717 = vunpack.c.l.b16 %v393
      %v718 = vunpack.c.h.b16 %v393
      %v719 = vunpack.c.l.b16 %v394
      %v720 = vunpack.c.h.b16 %v394
      %v721 = vunpack.c.l.b16 %v395
      %v722 = vunpack.c.l.b16 %v396
      %v723 = vunpack.c.h.b16 %v396
      %v724 = vunpack.c.l.b16 %v397
      %v725 = vunpack.c.h.b16 %v397
      %v726 = vunpack.c.l.b16 %v398
      %v727 = vunpack.c.l.b16 %v399
      %v728 = vunpack.c.h.b16 %v399
      %v729 = vunpack.c.l.b16 %v400
      %v730 = vunpack.c.h.b16 %v400
      %v731 = vunpack.c.l.b16 %v401
      %v732 = vunpack.c.l.b16 %v402
      %v733 = vunpack.c.h.b16 %v402
      %v734 = vunpack.c.l.b16 %v403
      %v735 = vunpack.c.h.b16 %v403
      %v736 = vunpack.c.l.b16 %v404
      %v737 = vunpack.c.l.b16 %v405
      %v738 = vunpack.c.h.b16 %v405
      %v739 = vunpack.c.l.b16 %v406
      %v740 = vunpack.c.h.b16 %v406
      %v741 = vunpack.c.l.b16 %v407
      %v742 = vunpack.c.l.b16 %v408
      %v743 = vunpack.c.h.b16 %v408
      %v744 = vunpack.c.l.b16 %v409
      %v745 = vunpack.c.h.b16 %v409
      %v746 = vunpack.c.l.b16 %v410
      %v747 = vunpack.c.l.b16 %v411
      %v748 = vunpack.c.h.b16 %v411
      %v749 = vunpack.c.l.b16 %v412
      %v750 = vunpack.c.h.b16 %v412
      %v751 = vunpack.c.l.b16 %v413
      %v752 = vunpack.c.l.b16 %v414
      %v753 = vunpack.c.h.b16 %v414
      %v754 = vunpack.c.l.b16 %v415
      %v755 = vunpack.c.h.b16 %v415
      %v756 = vunpack.c.l.b16 %v416
      %v757 = vunpack.c.l.b16 %v417
      %v758 = vunpack.c.h.b16 %v417
      %v759 = vunpack.c.l.b16 %v418
      %v760 = vunpack.c.h.b16 %v418
      %v761 = vunpack.c.l.b16 %v419
      %v762 = vunpack.c.l.b16 %v420
      %v763 = vunpack.c.h.b16 %v420
      %v764 = vunpack.c.l.b16 %v421
      %v765 = vunpack.c.h.b16 %v421
      %v766 = vunpack.c.l.b16 %v422
      %v767 = vunpack.c.l.b16 %v423
      %v768 = vunpack.c.h.b16 %v423
      %v769 = vunpack.c.l.b16 %v424
      %v770 = vunpack.c.h.b16 %v424
      %v771 = vunpack.c.l.b16 %v425
      %v772 = vunpack.c.l.b16 %v426
      %v773 = vunpack.c.h.b16 %v426
      %v774 = vunpack.c.l.b16 %v427
      %v775 = vunpack.c.h.b16 %v427
      %v776 = vunpack.c.l.b16 %v428
      %v777 = vunpack.c.l.b16 %v429
      %v778 = vunpack.c.h.b16 %v429
      %v779 = vunpack.c.l.b16 %v430
      %v780 = vunpack.c.h.b16 %v430
      %v781 = vunpack.c.l.b16 %v431
      %v782 = vunpack.c.l.b16 %v432
      %v783 = vunpack.c.h.b16 %v432
      %v784 = vunpack.c.l.b16 %v433
      %v785 = vunpack.c.h.b16 %v433
      %v786 = vunpack.c.l.b16 %v434
      %v787 = vunpack.c.l.b16 %v435
      %v788 = vunpack.c.h.b16 %v435
      %v789 = vunpack.c.l.b16 %v436
      %v790 = vunpack.c.h.b16 %v436
      %v791 = vunpack.c.l.b16 %v437
      %v792 = vunpack.c.l.b16 %v438
      %v793 = vunpack.c.h.b16 %v438
      %v794 = vunpack.c.l.b16 %v439
      %v795 = vunpack.c.h.b16 %v439
      %v796 = vunpack.c.l.b16 %v440
      %v797 = vunpack.c.l.b16 %v441
      %v798 = vunpack.c.h.b16 %v441
      %v799 = vunpack.c.l.b16 %v442
      %v800 = vunpack.c.h.b16 %v442
      %v801 = vunpack.c.l.b16 %v443
      %v802 = vunpack.c.l.b16 %v444
      %v803 = vunpack.c.h.b16 %v444
      %v804 = vunpack.c.l.b16 %v445
      %v805 = vunpack.c.h.b16 %v445
      %v806 = vunpack.c.l.b16 %v446
      %v807 = vpack.c.b16 %v632, %v627
      %v808 = vpack.c.b16 %v633, %v628
      %v809 = vpack.c.b16 %v634, %v629
      %v810 = vpack.c.b16 %v635, %v630
      %v811 = vpack.c.b16 %v636, %v631
      %v812 = vpack.c.b16 %v642, %v637
      %v813 = vpack.c.b16 %v643, %v638
      %v814 = vpack.c.b16 %v644, %v639
      %v815 = vpack.c.b16 %v645, %v640
      %v816 = vpack.c.b16 %v646, %v641
      %v817 = vpack.c.b16 %v652, %v647
      %v818 = vpack.c.b16 %v653, %v648
      %v819 = vpack.c.b16 %v654, %v649
      %v820 = vpack.c.b16 %v655, %v650
      %v821 = vpack.c.b16 %v656, %v651
      %v822 = vpack.c.b16 %v662, %v657
      %v823 = vpack.c.b16 %v663, %v658
      %v824 = vpack.c.b16 %v664, %v659
      %v825 = vpack.c.b16 %v665, %v660
      %v826 = vpack.c.b16 %v666, %v661
      %v827 = vpack.c.b16 %v672, %v667
      %v828 = vpack.c.b16 %v673, %v668
      %v829 = vpack.c.b16 %v674, %v669
      %v830 = vpack.c.b16 %v675, %v670
      %v831 = vpack.c.b16 %v676, %v671
      %v832 = vpack.c.b16 %v682, %v677
      %v833 = vpack.c.b16 %v683, %v678
      %v834 = vpack.c.b16 %v684, %v679
      %v835 = vpack.c.b16 %v685, %v680
      %v836 = vpack.c.b16 %v686, %v681
      %v837 = vpack.c.b16 %v692, %v687
      %v838 = vpack.c.b16 %v693, %v688
      %v839 = vpack.c.b16 %v694, %v689
      %v840 = vpack.c.b16 %v695, %v690
      %v841 = vpack.c.b16 %v696, %v691
      %v842 = vpack.c.b16 %v702, %v697
      %v843 = vpack.c.b16 %v703, %v698
      %v844 = vpack.c.b16 %v704, %v699
      %v845 = vpack.c.b16 %v705, %v700
      %v846 = vpack.c.b16 %v706, %v701
      %v847 = vpack.c.b16 %v712, %v707
      %v848 = vpack.c.b16 %v713, %v708
      %v849 = vpack.c.b16 %v714, %v709
      %v850 = vpack.c.b16 %v715, %v710
      %v851 = vpack.c.b16 %v716, %v711
      %v852 = vpack.c.b16 %v722, %v717
      %v853 = vpack.c.b16 %v723, %v718
      %v854 = vpack.c.b16 %v724, %v719
      %v855 = vpack.c.b16 %v725, %v720
      %v856 = vpack.c.b16 %v726, %v721
      %v857 = vpack.c.b16 %v732, %v727
      %v858 = vpack.c.b16 %v733, %v728
      %v859 = vpack.c.b16 %v734, %v729
      %v860 = vpack.c.b16 %v735, %v730
      %v861 = vpack.c.b16 %v736, %v731
      %v862 = vpack.c.b16 %v742, %v737
      %v863 = vpack.c.b16 %v743, %v738
      %v864 = vpack.c.b16 %v744, %v739
      %v865 = vpack.c.b16 %v745, %v740
      %v866 = vpack.c.b16 %v746, %v741
      %v867 = vpack.c.b16 %v752, %v747
      %v868 = vpack.c.b16 %v753, %v748
      %v869 = vpack.c.b16 %v754, %v749
      %v870 = vpack.c.b16 %v755, %v750
      %v871 = vpack.c.b16 %v756, %v751
      %v872 = vpack.c.b16 %v762, %v757
      %v873 = vpack.c.b16 %v763, %v758
      %v874 = vpack.c.b16 %v764, %v759
      %v875 = vpack.c.b16 %v765, %v760
      %v876 = vpack.c.b16 %v766, %v761
      %v877 = vpack.c.b16 %v772, %v767
      %v878 = vpack.c.b16 %v773, %v768
      %v879 = vpack.c.b16 %v774, %v769
      %v880 = vpack.c.b16 %v775, %v770
      %v881 = vpack.c.b16 %v776, %v771
      %v882 = vpack.c.b16 %v782, %v777
      %v883 = vpack.c.b16 %v783, %v778
      %v884 = vpack.c.b16 %v784, %v779
      %v885 = vpack.c.b16 %v785, %v780
      %v886 = vpack.c.b16 %v786, %v781
      %v887 = vpack.c.b16 %v792, %v787
      %v888 = vpack.c.b16 %v793, %v788
      %v889 = vpack.c.b16 %v794, %v789
      %v890 = vpack.c.b16 %v795, %v790
      %v891 = vpack.c.b16 %v796, %v791
      %v892 = vpack.c.b16 %v802, %v797
      %v893 = vpack.c.b16 %v803, %v798
      %v894 = vpack.c.b16 %v804, %v799
      %v895 = vpack.c.b16 %v805, %v800
      %v896 = vpack.c.b16 %v806, %v801
      %v1041 = vunpack.c.l.b16 %v447
      %v1042 = vunpack.c.l.b16 %v448
      %v1043 = vunpack.c.l.b16 %v449
      %v1044 = vunpack.c.l.b16 %v450
      %v1045 = vunpack.c.l.b16 %v451
      %v1046 = vunpack.c.l.b16 %v452
      %v1047 = vunpack.c.l.b16 %v453
      %v1048 = vunpack.c.l.b16 %v454
      %v1049 = vunpack.c.l.b16 %v455
      %v1050 = vunpack.c.l.b16 %v456
      %v1051 = vunpack.c.l.b16 %v457
      %v1052 = vunpack.c.l.b16 %v458
      %v1053 = vunpack.c.l.b16 %v459
      %v1054 = vunpack.c.l.b16 %v460
      %v1055 = vunpack.c.l.b16 %v461
      %v1056 = vunpack.c.l.b16 %v462
      %v1057 = vunpack.c.l.b16 %v463
      %v1058 = vunpack.c.l.b16 %v464
      %v1059 = vunpack.c.l.b16 %v465
      %v1060 = vunpack.c.l.b16 %v466
      %v1061 = vunpack.c.l.b16 %v467
      %v1062 = vunpack.c.l.b16 %v468
      %v1063 = vunpack.c.l.b16 %v469
      %v1064 = vunpack.c.l.b16 %v470
      %v1065 = vunpack.c.l.b16 %v471
      %v1066 = vunpack.c.l.b16 %v472
      %v1067 = vunpack.c.l.b16 %v473
      %v1068 = vunpack.c.l.b16 %v474
      %v1069 = vunpack.c.l.b16 %v475
      %v1070 = vunpack.c.l.b16 %v476
      %v1071 = vunpack.c.l.b16 %v477
      %v1072 = vunpack.c.l.b16 %v478
      %v1073 = vunpack.c.l.b16 %v479
      %v1074 = vunpack.c.l.b16 %v480
      %v1075 = vunpack.c.l.b16 %v481
      %v1076 = vunpack.c.l.b16 %v482
      %v1077 = vunpack.c.l.b16 %v483
      %v1078 = vunpack.c.l.b16 %v484
      %v1079 = vunpack.c.l.b16 %v485
      %v1080 = vunpack.c.l.b16 %v486
      %v1081 = vunpack.c.l.b16 %v487
      %v1082 = vunpack.c.l.b16 %v488
      %v1083 = vunpack.c.l.b16 %v489
      %v1084 = vunpack.c.l.b16 %v490
      %v1085 = vunpack.c.l.b16 %v491
      %v1086 = vunpack.c.l.b16 %v492
      %v1087 = vunpack.c.l.b16 %v493
      %v1088 = vunpack.c.l.b16 %v494
      %v1089 = vunpack.c.l.b16 %v495
      %v1090 = vunpack.c.l.b16 %v496
      %v1091 = vunpack.c.l.b16 %v497
      %v1092 = vunpack.c.l.b16 %v498
      %v1093 = vunpack.c.l.b16 %v499
      %v1094 = vunpack.c.l.b16 %v500
      %v1095 = vunpack.c.l.b16 %v501
      %v1096 = vunpack.c.l.b16 %v502
      %v1097 = vunpack.c.l.b16 %v503
      %v1098 = vunpack.c.l.b16 %v504
      %v1099 = vunpack.c.l.b16 %v505
      %v1100 = vunpack.c.l.b16 %v506
      %v1101 = vunpack.c.l.b16 %v507
      %v1102 = vunpack.c.l.b16 %v508
      %v1103 = vunpack.c.l.b16 %v509
      %v1104 = vunpack.c.l.b16 %v510
      %v1105 = vunpack.c.l.b16 %v511
      %v1106 = vunpack.c.l.b16 %v512
      %v1107 = vunpack.c.l.b16 %v513
      %v1108 = vunpack.c.l.b16 %v514
      %v1109 = vunpack.c.l.b16 %v515
      %v1110 = vunpack.c.l.b16 %v516
      %v1111 = vunpack.c.l.b16 %v517
      %v1112 = vunpack.c.l.b16 %v518
      %v1113 = vpack.c.b16 %v1042, %v1041
      %v1114 = vpack.c.b16 %v1044, %v1043
      %v1115 = vpack.c.b16 %v1046, %v1045
      %v1116 = vpack.c.b16 %v1048, %v1047
      %v1117 = vpack.c.b16 %v1050, %v1049
      %v1118 = vpack.c.b16 %v1052, %v1051
      %v1119 = vpack.c.b16 %v1054, %v1053
      %v1120 = vpack.c.b16 %v1056, %v1055
      %v1121 = vpack.c.b16 %v1058, %v1057
      %v1122 = vpack.c.b16 %v1060, %v1059
      %v1123 = vpack.c.b16 %v1062, %v1061
      %v1124 = vpack.c.b16 %v1064, %v1063
      %v1125 = vpack.c.b16 %v1066, %v1065
      %v1126 = vpack.c.b16 %v1068, %v1067
      %v1127 = vpack.c.b16 %v1070, %v1069
      %v1128 = vpack.c.b16 %v1072, %v1071
      %v1129 = vpack.c.b16 %v1074, %v1073
      %v1130 = vpack.c.b16 %v1076, %v1075
      %v1131 = vpack.c.b16 %v1078, %v1077
      %v1132 = vpack.c.b16 %v1080, %v1079
      %v1133 = vpack.c.b16 %v1082, %v1081
      %v1134 = vpack.c.b16 %v1084, %v1083
      %v1135 = vpack.c.b16 %v1086, %v1085
      %v1136 = vpack.c.b16 %v1088, %v1087
      %v1137 = vpack.c.b16 %v1090, %v1089
      %v1138 = vpack.c.b16 %v1092, %v1091
      %v1139 = vpack.c.b16 %v1094, %v1093
      %v1140 = vpack.c.b16 %v1096, %v1095
      %v1141 = vpack.c.b16 %v1098, %v1097
      %v1142 = vpack.c.b16 %v1100, %v1099
      %v1143 = vpack.c.b16 %v1102, %v1101
      %v1144 = vpack.c.b16 %v1104, %v1103
      %v1145 = vpack.c.b16 %v1106, %v1105
      %v1146 = vpack.c.b16 %v1108, %v1107
      %v1147 = vpack.c.b16 %v1110, %v1109
      %v1148 = vpack.c.b16 %v1112, %v1111
      %vm1185 = vcmask 523264
      %v1187 = vsel %vm1185, %v811, 0
      %v1190 = vsel %vm1185, %v816, 0
      %v1193 = vsel %vm1185, %v821, 0
      %v1196 = vsel %vm1185, %v826, 0
      %v1199 = vsel %vm1185, %v831, 0
      %v1202 = vsel %vm1185, %v836, 0
      %v1205 = vsel %vm1185, %v841, 0
      %v1208 = vsel %vm1185, %v846, 0
      %v1211 = vsel %vm1185, %v851, 0
      %v1214 = vsel %vm1185, %v856, 0
      %v1217 = vsel %vm1185, %v861, 0
      %v1220 = vsel %vm1185, %v866, 0
      %v1223 = vsel %vm1185, %v871, 0
      %v1226 = vsel %vm1185, %v876, 0
      %v1229 = vsel %vm1185, %v881, 0
      %v1232 = vsel %vm1185, %v886, 0
      %v1235 = vsel %vm1185, %v891, 0
      %v1238 = vsel %vm1185, %v896, 0
      %1240 = vmatprep.subr.bf16.mxu0 0
      %1241 = vmatpush1.bf16.msra.mxu0 %v1113
      %1242 = vmatprep.subr.bf16.mxu0 0
      %1243 = vmatpush1.bf16.msra.mxu0 %v1114
      %1244 = vmatprep.subr.bf16.mxu0 0
      %1245 = vmatpush1.bf16.msra.mxu0 %v1115
      %1246 = vmatprep.subr.bf16.mxu0 0
      %1247 = vmatpush1.bf16.msra.mxu0 %v1116
      %1248 = vmatprep.subr.bf16.mxu0 0
      %1249 = vmatpush1.bf16.msra.mxu0 %v1117
      %1250 = vmatprep.subr.bf16.mxu0 0
      %1251 = vmatpush1.bf16.msra.mxu0 %v1118
      %1252 = vmatprep.subr.bf16.mxu0 0
      %1253 = vmatpush1.bf16.msra.mxu0 %v1119
      %1254 = vmatprep.subr.bf16.mxu0 0
      %1255 = vmatpush1.bf16.msra.mxu0 %v1120
      %1256 = vmatprep.subr.bf16.mxu0 0
      %1257 = vmatpush1.bf16.msra.mxu0 %v1121
      %1258 = vmatprep.subr.bf16.mxu0 0
      %1259 = vmatpush1.bf16.msra.mxu0 %v1122
      %1260 = vmatprep.subr.bf16.mxu0 0
      %1261 = vmatpush1.bf16.msra.mxu0 %v1123
      %1262 = vmatprep.subr.bf16.mxu0 0
      %1263 = vmatpush1.bf16.msra.mxu0 %v1124
      %1264 = vmatprep.subr.bf16.mxu0 0
      %1265 = vmatpush1.bf16.msra.mxu0 %v1125
      %1266 = vmatprep.subr.bf16.mxu0 0
      %1267 = vmatpush1.bf16.msra.mxu0 %v1126
      %1268 = vmatprep.subr.bf16.mxu0 0
      %1269 = vmatpush1.bf16.msra.mxu0 %v1127
      %1270 = vmatprep.subr.bf16.mxu0 0
      %1271 = vmatpush1.bf16.msra.mxu0 %v1128
      %1272 = vmatprep.mubr.bf16.mxu0 %v808
      %1273 = vmatmul.mubr.bf16.gmra.mrb[0].mxu0 %v807
      %v1274 = vpop.f32.mrb[0].mxu0
      %v1275 = vadd.f32 0.0, %v1274
      %v1276 = vpop.f32.mrb[0].mxu0
      %v1277 = vpop.f32.mrb[0].mxu0
      %v1278 = vadd.f32 0.0, %v1277
      %v1279 = vpop.f32.mrb[0].mxu0
      %1280 = vmatprep.mubr.bf16.mxu0 %v813
      %1281 = vmatmul.mubr.bf16.gmra.mrb[0].mxu0 %v812
      %v1282 = vpop.f32.mrb[0].mxu0
      %v1283 = vadd.f32 0.0, %v1282
      %v1284 = vpop.f32.mrb[0].mxu0
      %v1285 = vpop.f32.mrb[0].mxu0
      %v1286 = vadd.f32 0.0, %v1285
      %v1287 = vpop.f32.mrb[0].mxu0
      %1288 = vmatprep.mubr.bf16.mxu0 %v818
      %1289 = vmatmul.mubr.bf16.gmra.mrb[0].mxu0 %v817
      %v1290 = vpop.f32.mrb[0].mxu0
      %v1291 = vadd.f32 0.0, %v1290
      %v1292 = vpop.f32.mrb[0].mxu0
      %v1293 = vpop.f32.mrb[0].mxu0
      %v1294 = vadd.f32 0.0, %v1293
      %v1295 = vpop.f32.mrb[0].mxu0
      %1296 = vmatprep.mubr.bf16.mxu0 %v823
      %1297 = vmatmul.mubr.bf16.gmra.mrb[0].mxu0 %v822
      %v1298 = vpop.f32.mrb[0].mxu0
      %v1299 = vadd.f32 0.0, %v1298
      %v1300 = vpop.f32.mrb[0].mxu0
      %v1301 = vpop.f32.mrb[0].mxu0
      %v1302 = vadd.f32 0.0, %v1301
      %v1303 = vpop.f32.mrb[0].mxu0
      %1304 = vmatprep.mubr.bf16.mxu0 %v828
      %1305 = vmatmul.mubr.bf16.gmra.mrb[0].mxu0 %v827
      %v1306 = vpop.f32.mrb[0].mxu0
      %v1307 = vadd.f32 0.0, %v1306
      %v1308 = vpop.f32.mrb[0].mxu0
      %v1309 = vpop.f32.mrb[0].mxu0
      %v1310 = vadd.f32 0.0, %v1309
      %v1311 = vpop.f32.mrb[0].mxu0
      %1312 = vmatprep.mubr.bf16.mxu0 %v833
      %1313 = vmatmul.mubr.bf16.gmra.mrb[0].mxu0 %v832
      %v1314 = vpop.f32.mrb[0].mxu0
      %v1315 = vadd.f32 0.0, %v1314
      %v1316 = vpop.f32.mrb[0].mxu0
      %v1317 = vpop.f32.mrb[0].mxu0
      %v1318 = vadd.f32 0.0, %v1317
      %v1319 = vpop.f32.mrb[0].mxu0
      %1320 = vmatprep.mubr.bf16.mxu0 %v838
      %1321 = vmatmul.mubr.bf16.gmra.mrb[0].mxu0 %v837
      %v1322 = vpop.f32.mrb[0].mxu0
      %v1323 = vadd.f32 0.0, %v1322
      %v1324 = vpop.f32.mrb[0].mxu0
      %v1325 = vpop.f32.mrb[0].mxu0
      %v1326 = vadd.f32 0.0, %v1325
      %v1327 = vpop.f32.mrb[0].mxu0
      %1328 = vmatprep.mubr.bf16.mxu0 %v843
      %1329 = vmatmul.mubr.bf16.gmra.mrb[0].mxu0 %v842
      %v1330 = vpop.f32.mrb[0].mxu0
      %v1331 = vadd.f32 0.0, %v1330
      %v1332 = vpop.f32.mrb[0].mxu0
      %v1333 = vpop.f32.mrb[0].mxu0
      %v1334 = vadd.f32 0.0, %v1333
      %v1335 = vpop.f32.mrb[0].mxu0
      %1336 = vmatprep.mubr.bf16.mxu0 %v848
      %1337 = vmatmul.mubr.bf16.gmra.mrb[0].mxu0 %v847
      %v1338 = vpop.f32.mrb[0].mxu0
      %v1339 = vadd.f32 0.0, %v1338
      %v1340 = vpop.f32.mrb[0].mxu0
      %v1341 = vpop.f32.mrb[0].mxu0
      %v1342 = vadd.f32 0.0, %v1341
      %v1343 = vpop.f32.mrb[0].mxu0
      %1344 = vmatprep.mubr.bf16.mxu0 %v853
      %1345 = vmatmul.mubr.bf16.gmra.mrb[0].mxu0 %v852
      %v1346 = vpop.f32.mrb[0].mxu0
      %v1347 = vadd.f32 0.0, %v1346
      %v1348 = vpop.f32.mrb[0].mxu0
      %v1349 = vpop.f32.mrb[0].mxu0
      %v1350 = vadd.f32 0.0, %v1349
      %v1351 = vpop.f32.mrb[0].mxu0
      %1352 = vmatprep.mubr.bf16.mxu0 %v858
      %1353 = vmatmul.mubr.bf16.gmra.mrb[0].mxu0 %v857
      %v1354 = vpop.f32.mrb[0].mxu0
      %v1355 = vadd.f32 0.0, %v1354
      %v1356 = vpop.f32.mrb[0].mxu0
      %v1357 = vpop.f32.mrb[0].mxu0
      %v1358 = vadd.f32 0.0, %v1357
      %v1359 = vpop.f32.mrb[0].mxu0
      %1360 = vmatprep.mubr.bf16.mxu0 %v863
      %1361 = vmatmul.mubr.bf16.gmra.mrb[0].mxu0 %v862
      %v1362 = vpop.f32.mrb[0].mxu0
      %v1363 = vadd.f32 0.0, %v1362
      %v1364 = vpop.f32.mrb[0].mxu0
      %v1365 = vpop.f32.mrb[0].mxu0
      %v1366 = vadd.f32 0.0, %v1365
      %v1367 = vpop.f32.mrb[0].mxu0
      %1368 = vmatprep.mubr.bf16.mxu0 %v868
      %1369 = vmatmul.mubr.bf16.gmra.mrb[0].mxu0 %v867
      %v1370 = vpop.f32.mrb[0].mxu0
      %v1371 = vadd.f32 0.0, %v1370
      %v1372 = vpop.f32.mrb[0].mxu0
      %v1373 = vpop.f32.mrb[0].mxu0
      %v1374 = vadd.f32 0.0, %v1373
      %v1375 = vpop.f32.mrb[0].mxu0
      %1376 = vmatprep.mubr.bf16.mxu0 %v873
      %1377 = vmatmul.mubr.bf16.gmra.mrb[0].mxu0 %v872
      %v1378 = vpop.f32.mrb[0].mxu0
      %v1379 = vadd.f32 0.0, %v1378
      %v1380 = vpop.f32.mrb[0].mxu0
      %v1381 = vpop.f32.mrb[0].mxu0
      %v1382 = vadd.f32 0.0, %v1381
      %v1383 = vpop.f32.mrb[0].mxu0
      %1384 = vmatprep.mubr.bf16.mxu0 %v878
      %1385 = vmatmul.mubr.bf16.gmra.mrb[0].mxu0 %v877
      %v1386 = vpop.f32.mrb[0].mxu0
      %v1387 = vadd.f32 0.0, %v1386
      %v1388 = vpop.f32.mrb[0].mxu0
      %v1389 = vpop.f32.mrb[0].mxu0
      %v1390 = vadd.f32 0.0, %v1389
      %v1391 = vpop.f32.mrb[0].mxu0
      %1392 = vmatprep.mubr.bf16.mxu0 %v883
      %1393 = vmatmul.mubr.bf16.gmra.mrb[0].mxu0 %v882
      %v1394 = vpop.f32.mrb[0].mxu0
      %v1395 = vadd.f32 0.0, %v1394
      %v1396 = vpop.f32.mrb[0].mxu0
      %v1397 = vpop.f32.mrb[0].mxu0
      %v1398 = vadd.f32 0.0, %v1397
      %v1399 = vpop.f32.mrb[0].mxu0
      %1400 = vmatprep.mubr.bf16.mxu0 %v888
      %1401 = vmatmul.mubr.bf16.gmra.mrb[0].mxu0 %v887
      %v1402 = vpop.f32.mrb[0].mxu0
      %v1403 = vadd.f32 0.0, %v1402
      %v1404 = vpop.f32.mrb[0].mxu0
      %v1405 = vpop.f32.mrb[0].mxu0
      %v1406 = vadd.f32 0.0, %v1405
      %v1407 = vpop.f32.mrb[0].mxu0
      %1408 = vmatprep.mubr.bf16.mxu0 %v893
      %1409 = vmatmul.mubr.bf16.gmra.mrb[0].mxu0 %v892
      %v1410 = vpop.f32.mrb[0].mxu0
      %v1411 = vadd.f32 0.0, %v1410
      %v1412 = vpop.f32.mrb[0].mxu0
      %v1413 = vpop.f32.mrb[0].mxu0
      %v1414 = vadd.f32 0.0, %v1413
      %v1415 = vpop.f32.mrb[0].mxu0
      %1416 = vdwg.mxu0
      %1417 = vmatprep.subr.bf16.mxu0 0
      %1418 = vmatpush1.bf16.msra.mxu0 %v1129
      %1419 = vmatprep.subr.bf16.mxu0 0
      %1420 = vmatpush1.bf16.msra.mxu0 %v1130
      %1421 = vmatprep.subr.bf16.mxu0 0
      %1422 = vmatpush1.bf16.msra.mxu0 %v1131
      %1423 = vmatprep.subr.bf16.mxu0 0
      %1424 = vmatpush1.bf16.msra.mxu0 %v1132
      %1425 = vmatprep.subr.bf16.mxu0 0
      %1426 = vmatpush1.bf16.msra.mxu0 %v1133
      %1427 = vmatprep.subr.bf16.mxu0 0
      %1428 = vmatpush1.bf16.msra.mxu0 %v1134
      %1429 = vmatprep.subr.bf16.mxu0 0
      %1430 = vmatpush1.bf16.msra.mxu0 %v1135
      %1431 = vmatprep.subr.bf16.mxu0 0
      %1432 = vmatpush1.bf16.msra.mxu0 %v1136
      %1433 = vmatprep.subr.bf16.mxu0 0
      %1434 = vmatpush1.bf16.msra.mxu0 %v1137
      %1435 = vmatprep.subr.bf16.mxu0 0
      %1436 = vmatpush1.bf16.msra.mxu0 %v1138
      %1437 = vmatprep.subr.bf16.mxu0 0
      %1438 = vmatpush1.bf16.msra.mxu0 %v1139
      %1439 = vmatprep.subr.bf16.mxu0 0
      %1440 = vmatpush1.bf16.msra.mxu0 %v1140
      %1441 = vmatprep.subr.bf16.mxu0 0
      %1442 = vmatpush1.bf16.msra.mxu0 %v1141
      %1443 = vmatprep.subr.bf16.mxu0 0
      %1444 = vmatpush1.bf16.msra.mxu0 %v1142
      %1445 = vmatprep.subr.bf16.mxu0 0
      %1446 = vmatpush1.bf16.msra.mxu0 %v1143
      %1447 = vmatprep.subr.bf16.mxu0 0
      %1448 = vmatpush1.bf16.msra.mxu0 %v1144
      %1449 = vmatprep.mubr.bf16.mxu0 %v810
      %1450 = vmatmul.mubr.bf16.gmra.mrb[0].mxu0 %v809
      %v1451 = vpop.f32.mrb[0].mxu0
      %v1452 = vadd.f32 %v1275, %v1451
      %v1453 = vpop.f32.mrb[0].mxu0
      %v1454 = vpop.f32.mrb[0].mxu0
      %v1455 = vadd.f32 %v1278, %v1454
      %v1456 = vpop.f32.mrb[0].mxu0
      %1457 = vmatprep.mubr.bf16.mxu0 %v815
      %1458 = vmatmul.mubr.bf16.gmra.mrb[0].mxu0 %v814
      %v1459 = vpop.f32.mrb[0].mxu0
      %v1460 = vadd.f32 %v1283, %v1459
      %v1461 = vpop.f32.mrb[0].mxu0
      %v1462 = vpop.f32.mrb[0].mxu0
      %v1463 = vadd.f32 %v1286, %v1462
      %v1464 = vpop.f32.mrb[0].mxu0
      %1465 = vmatprep.mubr.bf16.mxu0 %v820
      %1466 = vmatmul.mubr.bf16.gmra.mrb[0].mxu0 %v819
      %v1467 = vpop.f32.mrb[0].mxu0
      %v1468 = vadd.f32 %v1291, %v1467
      %v1469 = vpop.f32.mrb[0].mxu0
      %v1470 = vpop.f32.mrb[0].mxu0
      %v1471 = vadd.f32 %v1294, %v1470
      %v1472 = vpop.f32.mrb[0].mxu0
      %1473 = vmatprep.mubr.bf16.mxu0 %v825
      %1474 = vmatmul.mubr.bf16.gmra.mrb[0].mxu0 %v824
      %v1475 = vpop.f32.mrb[0].mxu0
      %v1476 = vadd.f32 %v1299, %v1475
      %v1477 = vpop.f32.mrb[0].mxu0
      %v1478 = vpop.f32.mrb[0].mxu0
      %v1479 = vadd.f32 %v1302, %v1478
      %v1480 = vpop.f32.mrb[0].mxu0
      %1481 = vmatprep.mubr.bf16.mxu0 %v830
      %1482 = vmatmul.mubr.bf16.gmra.mrb[0].mxu0 %v829
      %v1483 = vpop.f32.mrb[0].mxu0
      %v1484 = vadd.f32 %v1307, %v1483
      %v1485 = vpop.f32.mrb[0].mxu0
      %v1486 = vpop.f32.mrb[0].mxu0
      %v1487 = vadd.f32 %v1310, %v1486
      %v1488 = vpop.f32.mrb[0].mxu0
      %1489 = vmatprep.mubr.bf16.mxu0 %v835
      %1490 = vmatmul.mubr.bf16.gmra.mrb[0].mxu0 %v834
      %v1491 = vpop.f32.mrb[0].mxu0
      %v1492 = vadd.f32 %v1315, %v1491
      %v1493 = vpop.f32.mrb[0].mxu0
      %v1494 = vpop.f32.mrb[0].mxu0
      %v1495 = vadd.f32 %v1318, %v1494
      %v1496 = vpop.f32.mrb[0].mxu0
      %1497 = vmatprep.mubr.bf16.mxu0 %v840
      %1498 = vmatmul.mubr.bf16.gmra.mrb[0].mxu0 %v839
      %v1499 = vpop.f32.mrb[0].mxu0
      %v1500 = vadd.f32 %v1323, %v1499
      %v1501 = vpop.f32.mrb[0].mxu0
      %v1502 = vpop.f32.mrb[0].mxu0
      %v1503 = vadd.f32 %v1326, %v1502
      %v1504 = vpop.f32.mrb[0].mxu0
      %1505 = vmatprep.mubr.bf16.mxu0 %v845
      %1506 = vmatmul.mubr.bf16.gmra.mrb[0].mxu0 %v844
      %v1507 = vpop.f32.mrb[0].mxu0
      %v1508 = vadd.f32 %v1331, %v1507
      %v1509 = vpop.f32.mrb[0].mxu0
      %v1510 = vpop.f32.mrb[0].mxu0
      %v1511 = vadd.f32 %v1334, %v1510
      %v1512 = vpop.f32.mrb[0].mxu0
      %1513 = vmatprep.mubr.bf16.mxu0 %v850
      %1514 = vmatmul.mubr.bf16.gmra.mrb[0].mxu0 %v849
      %v1515 = vpop.f32.mrb[0].mxu0
      %v1516 = vadd.f32 %v1339, %v1515
      %v1517 = vpop.f32.mrb[0].mxu0
      %v1518 = vpop.f32.mrb[0].mxu0
      %v1519 = vadd.f32 %v1342, %v1518
      %v1520 = vpop.f32.mrb[0].mxu0
      %1521 = vmatprep.mubr.bf16.mxu0 %v855
      %1522 = vmatmul.mubr.bf16.gmra.mrb[0].mxu0 %v854
      %v1523 = vpop.f32.mrb[0].mxu0
      %v1524 = vadd.f32 %v1347, %v1523
      %v1525 = vpop.f32.mrb[0].mxu0
      %v1526 = vpop.f32.mrb[0].mxu0
      %v1527 = vadd.f32 %v1350, %v1526
      %v1528 = vpop.f32.mrb[0].mxu0
      %1529 = vmatprep.mubr.bf16.mxu0 %v860
      %1530 = vmatmul.mubr.bf16.gmra.mrb[0].mxu0 %v859
      %v1531 = vpop.f32.mrb[0].mxu0
      %v1532 = vadd.f32 %v1355, %v1531
      %v1533 = vpop.f32.mrb[0].mxu0
      %v1534 = vpop.f32.mrb[0].mxu0
      %v1535 = vadd.f32 %v1358, %v1534
      %v1536 = vpop.f32.mrb[0].mxu0
      %1537 = vmatprep.mubr.bf16.mxu0 %v865
      %1538 = vmatmul.mubr.bf16.gmra.mrb[0].mxu0 %v864
      %v1539 = vpop.f32.mrb[0].mxu0
      %v1540 = vadd.f32 %v1363, %v1539
      %v1541 = vpop.f32.mrb[0].mxu0
      %v1542 = vpop.f32.mrb[0].mxu0
      %v1543 = vadd.f32 %v1366, %v1542
      %v1544 = vpop.f32.mrb[0].mxu0
      %1545 = vmatprep.mubr.bf16.mxu0 %v870
      %1546 = vmatmul.mubr.bf16.gmra.mrb[0].mxu0 %v869
      %v1547 = vpop.f32.mrb[0].mxu0
      %v1548 = vadd.f32 %v1371, %v1547
      %v1549 = vpop.f32.mrb[0].mxu0
      %v1550 = vpop.f32.mrb[0].mxu0
      %v1551 = vadd.f32 %v1374, %v1550
      %v1552 = vpop.f32.mrb[0].mxu0
      %1553 = vmatprep.mubr.bf16.mxu0 %v875
      %1554 = vmatmul.mubr.bf16.gmra.mrb[0].mxu0 %v874
      %v1555 = vpop.f32.mrb[0].mxu0
      %v1556 = vadd.f32 %v1379, %v1555
      %v1557 = vpop.f32.mrb[0].mxu0
      %v1558 = vpop.f32.mrb[0].mxu0
      %v1559 = vadd.f32 %v1382, %v1558
      %v1560 = vpop.f32.mrb[0].mxu0
      %1561 = vmatprep.mubr.bf16.mxu0 %v880
      %1562 = vmatmul.mubr.bf16.gmra.mrb[0].mxu0 %v879
      %v1563 = vpop.f32.mrb[0].mxu0
      %v1564 = vadd.f32 %v1387, %v1563
      %v1565 = vpop.f32.mrb[0].mxu0
      %v1566 = vpop.f32.mrb[0].mxu0
      %v1567 = vadd.f32 %v1390, %v1566
      %v1568 = vpop.f32.mrb[0].mxu0
      %1569 = vmatprep.mubr.bf16.mxu0 %v885
      %1570 = vmatmul.mubr.bf16.gmra.mrb[0].mxu0 %v884
      %v1571 = vpop.f32.mrb[0].mxu0
      %v1572 = vadd.f32 %v1395, %v1571
      %v1573 = vpop.f32.mrb[0].mxu0
      %v1574 = vpop.f32.mrb[0].mxu0
      %v1575 = vadd.f32 %v1398, %v1574
      %v1576 = vpop.f32.mrb[0].mxu0
      %1577 = vmatprep.mubr.bf16.mxu0 %v890
      %1578 = vmatmul.mubr.bf16.gmra.mrb[0].mxu0 %v889
      %v1579 = vpop.f32.mrb[0].mxu0
      %v1580 = vadd.f32 %v1403, %v1579
      %v1581 = vpop.f32.mrb[0].mxu0
      %v1582 = vpop.f32.mrb[0].mxu0
      %v1583 = vadd.f32 %v1406, %v1582
      %v1584 = vpop.f32.mrb[0].mxu0
      %1585 = vmatprep.mubr.bf16.mxu0 %v895
      %1586 = vmatmul.mubr.bf16.gmra.mrb[0].mxu0 %v894
      %v1587 = vpop.f32.mrb[0].mxu0
      %v1588 = vadd.f32 %v1411, %v1587
      %v1589 = vpop.f32.mrb[0].mxu0
      %v1590 = vpop.f32.mrb[0].mxu0
      %v1591 = vadd.f32 %v1414, %v1590
      %v1592 = vpop.f32.mrb[0].mxu0
      %1593 = vdwg.mxu0
      %1594 = vmatprep.subr.bf16.mxu0 0
      %1595 = vmatpush1.bf16.msra.mxu0 %v1145
      %1596 = vmatprep.subr.bf16.mxu0 0
      %1597 = vmatpush1.bf16.msra.mxu0 %v1146
      %1598 = vmatprep.subr.bf16.mxu0 0
      %1599 = vmatpush1.bf16.msra.mxu0 %v1147
      %1600 = vmatprep.subr.bf16.mxu0 0
      %1601 = vmatpush1.bf16.msra.mxu0 %v1148
      %1602 = vmatprep.subr.bf16.mxu0 0
      %1603 = vmatpush1.bf16.msra.mxu0 0
      %1604 = vmatprep.subr.bf16.mxu0 0
      %1605 = vmatpush1.bf16.msra.mxu0 0
      %1606 = vmatprep.subr.bf16.mxu0 0
      %1607 = vmatpush1.bf16.msra.mxu0 0
      %1608 = vmatprep.subr.bf16.mxu0 0
      %1609 = vmatpush1.bf16.msra.mxu0 0
      %1610 = vmatprep.subr.bf16.mxu0 0
      %1611 = vmatpush1.bf16.msra.mxu0 0
      %1612 = vmatprep.subr.bf16.mxu0 0
      %1613 = vmatpush1.bf16.msra.mxu0 0
      %1614 = vmatprep.subr.bf16.mxu0 0
      %1615 = vmatpush1.bf16.msra.mxu0 0
      %1616 = vmatprep.subr.bf16.mxu0 0
      %1617 = vmatpush1.bf16.msra.mxu0 0
      %1618 = vmatprep.subr.bf16.mxu0 0
      %1619 = vmatpush1.bf16.msra.mxu0 0
      %1620 = vmatprep.subr.bf16.mxu0 0
      %1621 = vmatpush1.bf16.msra.mxu0 0
      %1622 = vmatprep.subr.bf16.mxu0 0
      %1623 = vmatpush1.bf16.msra.mxu0 0
      %1624 = vmatprep.subr.bf16.mxu0 0
      %1625 = vmatpush1.bf16.msra.mxu0 0
      %1626 = vmatprep.mubr.bf16.mxu0 0
      %1627 = vmatmul.mubr.bf16.gmra.mrb[0].mxu0 %v1187
      %v1628 = vpop.f32.mrb[0].mxu0
      %v1629 = vadd.f32 %v1452, %v1628
      %v1630 = vpop.f32.mrb[0].mxu0
      %v1631 = vpop.f32.mrb[0].mxu0
      %v1632 = vadd.f32 %v1455, %v1631
      %v1633 = vpop.f32.mrb[0].mxu0
      %1634 = vmatprep.mubr.bf16.mxu0 0
      %1635 = vmatmul.mubr.bf16.gmra.mrb[0].mxu0 %v1190
      %v1636 = vpop.f32.mrb[0].mxu0
      %v1637 = vadd.f32 %v1460, %v1636
      %v1638 = vpop.f32.mrb[0].mxu0
      %v1639 = vpop.f32.mrb[0].mxu0
      %v1640 = vadd.f32 %v1463, %v1639
      %v1641 = vpop.f32.mrb[0].mxu0
      %1642 = vmatprep.mubr.bf16.mxu0 0
      %1643 = vmatmul.mubr.bf16.gmra.mrb[0].mxu0 %v1193
      %v1644 = vpop.f32.mrb[0].mxu0
      %v1645 = vadd.f32 %v1468, %v1644
      %v1646 = vpop.f32.mrb[0].mxu0
      %v1647 = vpop.f32.mrb[0].mxu0
      %v1648 = vadd.f32 %v1471, %v1647
      %v1649 = vpop.f32.mrb[0].mxu0
      %1650 = vmatprep.mubr.bf16.mxu0 0
      %1651 = vmatmul.mubr.bf16.gmra.mrb[0].mxu0 %v1196
      %v1652 = vpop.f32.mrb[0].mxu0
      %v1653 = vadd.f32 %v1476, %v1652
      %v1654 = vpop.f32.mrb[0].mxu0
      %v1655 = vpop.f32.mrb[0].mxu0
      %v1656 = vadd.f32 %v1479, %v1655
      %v1657 = vpop.f32.mrb[0].mxu0
      %1658 = vmatprep.mubr.bf16.mxu0 0
      %1659 = vmatmul.mubr.bf16.gmra.mrb[0].mxu0 %v1199
      %v1660 = vpop.f32.mrb[0].mxu0
      %v1661 = vadd.f32 %v1484, %v1660
      %v1662 = vpop.f32.mrb[0].mxu0
      %v1663 = vpop.f32.mrb[0].mxu0
      %v1664 = vadd.f32 %v1487, %v1663
      %v1665 = vpop.f32.mrb[0].mxu0
      %1666 = vmatprep.mubr.bf16.mxu0 0
      %1667 = vmatmul.mubr.bf16.gmra.mrb[0].mxu0 %v1202
      %v1668 = vpop.f32.mrb[0].mxu0
      %v1669 = vadd.f32 %v1492, %v1668
      %v1670 = vpop.f32.mrb[0].mxu0
      %v1671 = vpop.f32.mrb[0].mxu0
      %v1672 = vadd.f32 %v1495, %v1671
      %v1673 = vpop.f32.mrb[0].mxu0
      %1674 = vmatprep.mubr.bf16.mxu0 0
      %1675 = vmatmul.mubr.bf16.gmra.mrb[0].mxu0 %v1205
      %v1676 = vpop.f32.mrb[0].mxu0
      %v1677 = vadd.f32 %v1500, %v1676
      %v1678 = vpop.f32.mrb[0].mxu0
      %v1679 = vpop.f32.mrb[0].mxu0
      %v1680 = vadd.f32 %v1503, %v1679
      %v1681 = vpop.f32.mrb[0].mxu0
      %1682 = vmatprep.mubr.bf16.mxu0 0
      %1683 = vmatmul.mubr.bf16.gmra.mrb[0].mxu0 %v1208
      %v1684 = vpop.f32.mrb[0].mxu0
      %v1685 = vadd.f32 %v1508, %v1684
      %v1686 = vpop.f32.mrb[0].mxu0
      %v1687 = vpop.f32.mrb[0].mxu0
      %v1688 = vadd.f32 %v1511, %v1687
      %v1689 = vpop.f32.mrb[0].mxu0
      %1690 = vmatprep.mubr.bf16.mxu0 0
      %1691 = vmatmul.mubr.bf16.gmra.mrb[0].mxu0 %v1211
      %v1692 = vpop.f32.mrb[0].mxu0
      %v1693 = vadd.f32 %v1516, %v1692
      %v1694 = vpop.f32.mrb[0].mxu0
      %v1695 = vpop.f32.mrb[0].mxu0
      %v1696 = vadd.f32 %v1519, %v1695
      %v1697 = vpop.f32.mrb[0].mxu0
      %1698 = vmatprep.mubr.bf16.mxu0 0
      %1699 = vmatmul.mubr.bf16.gmra.mrb[0].mxu0 %v1214
      %v1700 = vpop.f32.mrb[0].mxu0
      %v1701 = vadd.f32 %v1524, %v1700
      %v1702 = vpop.f32.mrb[0].mxu0
      %v1703 = vpop.f32.mrb[0].mxu0
      %v1704 = vadd.f32 %v1527, %v1703
      %v1705 = vpop.f32.mrb[0].mxu0
      %1706 = vmatprep.mubr.bf16.mxu0 0
      %1707 = vmatmul.mubr.bf16.gmra.mrb[0].mxu0 %v1217
      %v1708 = vpop.f32.mrb[0].mxu0
      %v1709 = vadd.f32 %v1532, %v1708
      %v1710 = vpop.f32.mrb[0].mxu0
      %v1711 = vpop.f32.mrb[0].mxu0
      %v1712 = vadd.f32 %v1535, %v1711
      %v1713 = vpop.f32.mrb[0].mxu0
      %1714 = vmatprep.mubr.bf16.mxu0 0
      %1715 = vmatmul.mubr.bf16.gmra.mrb[0].mxu0 %v1220
      %v1716 = vpop.f32.mrb[0].mxu0
      %v1717 = vadd.f32 %v1540, %v1716
      %v1718 = vpop.f32.mrb[0].mxu0
      %v1719 = vpop.f32.mrb[0].mxu0
      %v1720 = vadd.f32 %v1543, %v1719
      %v1721 = vpop.f32.mrb[0].mxu0
      %1722 = vmatprep.mubr.bf16.mxu0 0
      %1723 = vmatmul.mubr.bf16.gmra.mrb[0].mxu0 %v1223
      %v1724 = vpop.f32.mrb[0].mxu0
      %v1725 = vadd.f32 %v1548, %v1724
      %v1726 = vpop.f32.mrb[0].mxu0
      %v1727 = vpop.f32.mrb[0].mxu0
      %v1728 = vadd.f32 %v1551, %v1727
      %v1729 = vpop.f32.mrb[0].mxu0
      %1730 = vmatprep.mubr.bf16.mxu0 0
      %1731 = vmatmul.mubr.bf16.gmra.mrb[0].mxu0 %v1226
      %v1732 = vpop.f32.mrb[0].mxu0
      %v1733 = vadd.f32 %v1556, %v1732
      %v1734 = vpop.f32.mrb[0].mxu0
      %v1735 = vpop.f32.mrb[0].mxu0
      %v1736 = vadd.f32 %v1559, %v1735
      %v1737 = vpop.f32.mrb[0].mxu0
      %1738 = vmatprep.mubr.bf16.mxu0 0
      %1739 = vmatmul.mubr.bf16.gmra.mrb[0].mxu0 %v1229
      %v1740 = vpop.f32.mrb[0].mxu0
      %v1741 = vadd.f32 %v1564, %v1740
      %v1742 = vpop.f32.mrb[0].mxu0
      %v1743 = vpop.f32.mrb[0].mxu0
      %v1744 = vadd.f32 %v1567, %v1743
      %v1745 = vpop.f32.mrb[0].mxu0
      %1746 = vmatprep.mubr.bf16.mxu0 0
      %1747 = vmatmul.mubr.bf16.gmra.mrb[0].mxu0 %v1232
      %v1748 = vpop.f32.mrb[0].mxu0
      %v1749 = vadd.f32 %v1572, %v1748
      %v1750 = vpop.f32.mrb[0].mxu0
      %v1751 = vpop.f32.mrb[0].mxu0
      %v1752 = vadd.f32 %v1575, %v1751
      %v1753 = vpop.f32.mrb[0].mxu0
      %1754 = vmatprep.mubr.bf16.mxu0 0
      %1755 = vmatmul.mubr.bf16.gmra.mrb[0].mxu0 %v1235
      %v1756 = vpop.f32.mrb[0].mxu0
      %v1757 = vadd.f32 %v1580, %v1756
      %v1758 = vpop.f32.mrb[0].mxu0
      %v1759 = vpop.f32.mrb[0].mxu0
      %v1760 = vadd.f32 %v1583, %v1759
      %v1761 = vpop.f32.mrb[0].mxu0
      %1762 = vmatprep.mubr.bf16.mxu0 0
      %1763 = vmatmul.mubr.bf16.gmra.mrb[0].mxu0 %v1238
      %v1764 = vpop.f32.mrb[0].mxu0
      %v1765 = vadd.f32 %v1588, %v1764
      %v1766 = vpop.f32.mrb[0].mxu0
      %v1767 = vpop.f32.mrb[0].mxu0
      %v1768 = vadd.f32 %v1591, %v1767
      %v1769 = vpop.f32.mrb[0].mxu0
      %1770 = vdwg.mxu0
      %v1771 = vld [vmem:[%s2] sm:$0x1]
      %v1773 = vlaneseq
      %v1774 = vshrl.u32 %v1773, 7
      %v1775 = vsub.s32 0, %v1774
      %v1776 = vrot.slane %v1771, %v1775
      %v1778 = vmul.f32 %v1629, %v1776
      %v1779 = vmul.f32 %v1632, %v1776
      %v1780 = vmul.f32 %v1637, %v1776
      %v1781 = vmul.f32 %v1640, %v1776
      %v1782 = vmul.f32 %v1645, %v1776
      %v1783 = vmul.f32 %v1648, %v1776
      %v1784 = vmul.f32 %v1653, %v1776
      %v1785 = vmul.f32 %v1656, %v1776
      %v1786 = vmul.f32 %v1661, %v1776
      %v1787 = vmul.f32 %v1664, %v1776
      %v1788 = vmul.f32 %v1669, %v1776
      %v1789 = vmul.f32 %v1672, %v1776
      %v1790 = vmul.f32 %v1677, %v1776
      %v1791 = vmul.f32 %v1680, %v1776
      %v1792 = vmul.f32 %v1685, %v1776
      %v1793 = vmul.f32 %v1688, %v1776
      %v1794 = vmul.f32 %v1693, %v1776
      %v1795 = vmul.f32 %v1696, %v1776
      %v1796 = vmul.f32 %v1701, %v1776
      %v1797 = vmul.f32 %v1704, %v1776
      %v1798 = vmul.f32 %v1709, %v1776
      %v1799 = vmul.f32 %v1712, %v1776
      %v1800 = vmul.f32 %v1717, %v1776
      %v1801 = vmul.f32 %v1720, %v1776
      %v1802 = vmul.f32 %v1725, %v1776
      %v1803 = vmul.f32 %v1728, %v1776
      %v1804 = vmul.f32 %v1733, %v1776
      %v1805 = vmul.f32 %v1736, %v1776
      %v1806 = vmul.f32 %v1741, %v1776
      %v1807 = vmul.f32 %v1744, %v1776
      %v1808 = vmul.f32 %v1749, %v1776
      %v1809 = vmul.f32 %v1752, %v1776
      %v1810 = vmul.f32 %v1757, %v1776
      %v1811 = vmul.f32 %v1760, %v1776
      %v1812 = vmul.f32 %v1765, %v1776
      %v1813 = vmul.f32 %v1768, %v1776
      %v1814 = vld [vmem:[%s3] sm:$0x1]
      %v1816 = vlaneseq
      %v1817 = vshrl.u32 %v1816, 7
      %v1818 = vsub.s32 0, %v1817
      %v1819 = vrot.slane %v1814, %v1818
      %v1821 = vadd.f32 %v1778, %v1819
      %v1822 = vadd.f32 %v1779, %v1819
      %v1823 = vadd.f32 %v1780, %v1819
      %v1824 = vadd.f32 %v1781, %v1819
      %v1825 = vadd.f32 %v1782, %v1819
      %v1826 = vadd.f32 %v1783, %v1819
      %v1827 = vadd.f32 %v1784, %v1819
      %v1828 = vadd.f32 %v1785, %v1819
      %v1829 = vadd.f32 %v1786, %v1819
      %v1830 = vadd.f32 %v1787, %v1819
      %v1831 = vadd.f32 %v1788, %v1819
      %v1832 = vadd.f32 %v1789, %v1819
      %v1833 = vadd.f32 %v1790, %v1819
      %v1834 = vadd.f32 %v1791, %v1819
      %v1835 = vadd.f32 %v1792, %v1819
      %v1836 = vadd.f32 %v1793, %v1819
      %v1837 = vadd.f32 %v1794, %v1819
      %v1838 = vadd.f32 %v1795, %v1819
      %v1839 = vadd.f32 %v1796, %v1819
      %v1840 = vadd.f32 %v1797, %v1819
      %v1841 = vadd.f32 %v1798, %v1819
      %v1842 = vadd.f32 %v1799, %v1819
      %v1843 = vadd.f32 %v1800, %v1819
      %v1844 = vadd.f32 %v1801, %v1819
      %v1845 = vadd.f32 %v1802, %v1819
      %v1846 = vadd.f32 %v1803, %v1819
      %v1847 = vadd.f32 %v1804, %v1819
      %v1848 = vadd.f32 %v1805, %v1819
      %v1849 = vadd.f32 %v1806, %v1819
      %v1850 = vadd.f32 %v1807, %v1819
      %v1851 = vadd.f32 %v1808, %v1819
      %v1852 = vadd.f32 %v1809, %v1819
      %v1853 = vadd.f32 %v1810, %v1819
      %v1854 = vadd.f32 %v1811, %v1819
      %v1855 = vadd.f32 %v1812, %v1819
      %v1856 = vadd.f32 %v1813, %v1819
      %v1857 = vmax.f32 %v1821, 0.0
      %v1858 = vmax.f32 %v1822, 0.0
      %v1859 = vmax.f32 %v1823, 0.0
      %v1860 = vmax.f32 %v1824, 0.0
      %v1861 = vmax.f32 %v1825, 0.0
      %v1862 = vmax.f32 %v1826, 0.0
      %v1863 = vmax.f32 %v1827, 0.0
      %v1864 = vmax.f32 %v1828, 0.0
      %v1865 = vmax.f32 %v1829, 0.0
      %v1866 = vmax.f32 %v1830, 0.0
      %v1867 = vmax.f32 %v1831, 0.0
      %v1868 = vmax.f32 %v1832, 0.0
      %v1869 = vmax.f32 %v1833, 0.0
      %v1870 = vmax.f32 %v1834, 0.0
      %v1871 = vmax.f32 %v1835, 0.0
      %v1872 = vmax.f32 %v1836, 0.0
      %v1873 = vmax.f32 %v1837, 0.0
      %v1874 = vmax.f32 %v1838, 0.0
      %v1875 = vmax.f32 %v1839, 0.0
      %v1876 = vmax.f32 %v1840, 0.0
      %v1877 = vmax.f32 %v1841, 0.0
      %v1878 = vmax.f32 %v1842, 0.0
      %v1879 = vmax.f32 %v1843, 0.0
      %v1880 = vmax.f32 %v1844, 0.0
      %v1881 = vmax.f32 %v1845, 0.0
      %v1882 = vmax.f32 %v1846, 0.0
      %v1883 = vmax.f32 %v1847, 0.0
      %v1884 = vmax.f32 %v1848, 0.0
      %v1885 = vmax.f32 %v1849, 0.0
      %v1886 = vmax.f32 %v1850, 0.0
      %v1887 = vmax.f32 %v1851, 0.0
      %v1888 = vmax.f32 %v1852, 0.0
      %v1889 = vmax.f32 %v1853, 0.0
      %v1890 = vmax.f32 %v1854, 0.0
      %v1891 = vmax.f32 %v1855, 0.0
      %v1892 = vmax.f32 %v1856, 0.0
      %v1893 = vld [vmem:[%s4] sm:$0xff]
      %v1894 = vld [vmem:[%s4 + $0x8] sm:$0xff]
      %v1895 = vld [vmem:[%s4 + $0x10] sm:$0xff]
      %vm1896 = vcmask 261120
      %v1898 = vsel %vm1896, %v1895, 0
      %1900 = vmatprep.subr.mxu0 0.0
      %1901 = vmatpush1.msra.mxu0 %v1857
      %1902 = vmatprep.subr.mxu0 0.0
      %1903 = vmatpush1.msra.mxu0 %v1858
      %1904 = vmatprep.subr.mxu0 0.0
      %1905 = vmatpush1.msra.mxu0 %v1859
      %1906 = vmatprep.subr.mxu0 0.0
      %1907 = vmatpush1.msra.mxu0 %v1860
      %1908 = vmatprep.subr.mxu0 0.0
      %1909 = vmatpush1.msra.mxu0 %v1861
      %1910 = vmatprep.subr.mxu0 0.0
      %1911 = vmatpush1.msra.mxu0 %v1862
      %1912 = vmatprep.subr.mxu0 0.0
      %1913 = vmatpush1.msra.mxu0 %v1863
      %1914 = vmatprep.subr.mxu0 0.0
      %1915 = vmatpush1.msra.mxu0 %v1864
      %1916 = vmatprep.subr.mxu0 0.0
      %1917 = vmatpush1.msra.mxu0 %v1865
      %1918 = vmatprep.subr.mxu0 0.0
      %1919 = vmatpush1.msra.mxu0 %v1866
      %1920 = vmatprep.subr.mxu0 0.0
      %1921 = vmatpush1.msra.mxu0 %v1867
      %1922 = vmatprep.subr.mxu0 0.0
      %1923 = vmatpush1.msra.mxu0 %v1868
      %1924 = vmatprep.subr.mxu0 0.0
      %1925 = vmatpush1.msra.mxu0 %v1869
      %1926 = vmatprep.subr.mxu0 0.0
      %1927 = vmatpush1.msra.mxu0 %v1870
      %1928 = vmatprep.subr.mxu0 0.0
      %1929 = vmatpush1.msra.mxu0 %v1871
      %1930 = vmatprep.subr.mxu0 0.0
      %1931 = vmatpush1.msra.mxu0 %v1872
      %1932 = vmatprep.subr.mxu0 0.0
      %1933 = vmatpush1.msra.mxu0 %v1873
      %1934 = vmatprep.subr.mxu0 0.0
      %1935 = vmatpush1.msra.mxu0 %v1874
      %1936 = vmatprep.subr.mxu0 0.0
      %1937 = vmatpush1.msra.mxu0 %v1875
      %1938 = vmatprep.subr.mxu0 0.0
      %1939 = vmatpush1.msra.mxu0 %v1876
      %1940 = vmatprep.subr.mxu0 0.0
      %1941 = vmatpush1.msra.mxu0 %v1877
      %1942 = vmatprep.subr.mxu0 0.0
      %1943 = vmatpush1.msra.mxu0 %v1878
      %1944 = vmatprep.subr.mxu0 0.0
      %1945 = vmatpush1.msra.mxu0 %v1879
      %1946 = vmatprep.subr.mxu0 0.0
      %1947 = vmatpush1.msra.mxu0 %v1880
      %1948 = vmatprep.subr.mxu0 0.0
      %1949 = vmatpush1.msra.mxu0 %v1881
      %1950 = vmatprep.subr.mxu0 0.0
      %1951 = vmatpush1.msra.mxu0 %v1882
      %1952 = vmatprep.subr.mxu0 0.0
      %1953 = vmatpush1.msra.mxu0 %v1883
      %1954 = vmatprep.subr.mxu0 0.0
      %1955 = vmatpush1.msra.mxu0 %v1884
      %1956 = vmatprep.subr.mxu0 0.0
      %1957 = vmatpush1.msra.mxu0 %v1885
      %1958 = vmatprep.subr.mxu0 0.0
      %1959 = vmatpush1.msra.mxu0 %v1886
      %1960 = vmatprep.subr.mxu0 0.0
      %1961 = vmatpush1.msra.mxu0 %v1887
      %1962 = vmatprep.subr.mxu0 0.0
      %1963 = vmatpush1.msra.mxu0 %v1888
      %1964 = vmatprep.mubr.f32.mxu0 %v1894
      %1965 = vmatmul.mubr.f32.gmra.mrb[0].mxu0 %v1893
      %v1966 = vpop.f32.mrb[0].mxu0
      %v1967 = vadd.f32 0.0, %v1966
      %v1968 = vpop.f32.mrb[0].mxu0
      %1969 = vdwg.mxu0
      %1970 = vmatprep.subr.mxu0 0.0
      %1971 = vmatpush1.msra.mxu0 %v1889
      %1972 = vmatprep.subr.mxu0 0.0
      %1973 = vmatpush1.msra.mxu0 %v1890
      %1974 = vmatprep.subr.mxu0 0.0
      %1975 = vmatpush1.msra.mxu0 %v1891
      %1976 = vmatprep.subr.mxu0 0.0
      %1977 = vmatpush1.msra.mxu0 %v1892
      %1978 = vmatprep.subr.mxu0 0.0
      %1979 = vmatpush1.msra.mxu0 0.0
      %1980 = vmatprep.subr.mxu0 0.0
      %1981 = vmatpush1.msra.mxu0 0.0
      %1982 = vmatprep.subr.mxu0 0.0
      %1983 = vmatpush1.msra.mxu0 0.0
      %1984 = vmatprep.subr.mxu0 0.0
      %1985 = vmatpush1.msra.mxu0 0.0
      %1986 = vmatprep.subr.mxu0 0.0
      %1987 = vmatpush1.msra.mxu0 0.0
      %1988 = vmatprep.subr.mxu0 0.0
      %1989 = vmatpush1.msra.mxu0 0.0
      %1990 = vmatprep.subr.mxu0 0.0
      %1991 = vmatpush1.msra.mxu0 0.0
      %1992 = vmatprep.subr.mxu0 0.0
      %1993 = vmatpush1.msra.mxu0 0.0
      %1994 = vmatprep.subr.mxu0 0.0
      %1995 = vmatpush1.msra.mxu0 0.0
      %1996 = vmatprep.subr.mxu0 0.0
      %1997 = vmatpush1.msra.mxu0 0.0
      %1998 = vmatprep.subr.mxu0 0.0
      %1999 = vmatpush1.msra.mxu0 0.0
      %2000 = vmatprep.subr.mxu0 0.0
      %2001 = vmatpush1.msra.mxu0 0.0
      %2002 = vmatprep.subr.mxu0 0.0
      %2003 = vmatpush1.msra.mxu0 0.0
      %2004 = vmatprep.subr.mxu0 0.0
      %2005 = vmatpush1.msra.mxu0 0.0
      %2006 = vmatprep.subr.mxu0 0.0
      %2007 = vmatpush1.msra.mxu0 0.0
      %2008 = vmatprep.subr.mxu0 0.0
      %2009 = vmatpush1.msra.mxu0 0.0
      %2010 = vmatprep.subr.mxu0 0.0
      %2011 = vmatpush1.msra.mxu0 0.0
      %2012 = vmatprep.subr.mxu0 0.0
      %2013 = vmatpush1.msra.mxu0 0.0
      %2014 = vmatprep.subr.mxu0 0.0
      %2015 = vmatpush1.msra.mxu0 0.0
      %2016 = vmatprep.subr.mxu0 0.0
      %2017 = vmatpush1.msra.mxu0 0.0
      %2018 = vmatprep.subr.mxu0 0.0
      %2019 = vmatpush1.msra.mxu0 0.0
      %2020 = vmatprep.subr.mxu0 0.0
      %2021 = vmatpush1.msra.mxu0 0.0
      %2022 = vmatprep.subr.mxu0 0.0
      %2023 = vmatpush1.msra.mxu0 0.0
      %2024 = vmatprep.subr.mxu0 0.0
      %2025 = vmatpush1.msra.mxu0 0.0
      %2026 = vmatprep.subr.mxu0 0.0
      %2027 = vmatpush1.msra.mxu0 0.0
      %2028 = vmatprep.subr.mxu0 0.0
      %2029 = vmatpush1.msra.mxu0 0.0
      %2030 = vmatprep.subr.mxu0 0.0
      %2031 = vmatpush1.msra.mxu0 0.0
      %2032 = vmatprep.subr.mxu0 0.0
      %2033 = vmatpush1.msra.mxu0 0.0
      %2034 = vmatprep.mubr.f32.mxu0 0.0
      %2035 = vmatmul.mubr.f32.gmra.mrb[0].mxu0 %v1898
      %v2036 = vpop.f32.mrb[0].mxu0
      %v2037 = vadd.f32 %v1967, %v2036
      %v2038 = vpop.f32.mrb[0].mxu0
      %2039 = vdwg.mxu0
      %v2040 = vmul.f32 %v2037, 0.027777778
      %v2041 = vld [vmem:[%s5] sm:$0xff]
      %v2042 = vld [vmem:[%s5 + $0x8] sm:$0xff]
      %v2043 = vld [vmem:[%s5 + $0x10] sm:$0xff]
      %v2044 = vld [vmem:[%s5 + $0x18] sm:$0xff]
      %v2045 = vld [vmem:[%s5 + $0x20] sm:$0xff]
      %v2046 = vld [vmem:[%s5 + $0x28] sm:$0xff]
      %v2047 = vld [vmem:[%s5 + $0x30] sm:$0xff]
      %v2048 = vld [vmem:[%s5 + $0x38] sm:$0xff]
      %v2049 = vld [vmem:[%s5 + $0x40] sm:$0xff]
      %v2050 = vld [vmem:[%s5 + $0x48] sm:$0xff]
      %v2051 = vld [vmem:[%s5 + $0x50] sm:$0xff]
      %v2052 = vld [vmem:[%s5 + $0x58] sm:$0xff]
      %v2053 = vld [vmem:[%s6] sm:$0x7]
      %v2055 = vlaneseq
      %v2056 = vshrl.u32 %v2055, 7
      %v2057 = vsub.s32 0, %v2056
      %v2058 = vrot.slane %v2053, %v2057
      %v2059 = vlaneseq
      %v2060 = vshrl.u32 %v2059, 7
      %v2061 = vsub.s32 1, %v2060
      %v2062 = vrot.slane %v2053, %v2061
      %v2063 = vlaneseq
      %v2064 = vshrl.u32 %v2063, 7
      %v2065 = vsub.s32 2, %v2064
      %v2066 = vrot.slane %v2053, %v2065
      %v2071 = vsel %vm1896, %v2040, 0
      %2073 = vmatprep.subr.mxu0 %v2042
      %2074 = vmatpush1.msra.mxu0 %v2041
      %2075 = vmatprep.subr.mxu0 %v2045
      %2076 = vmatpush1.msra.mxu0 %v2044
      %2077 = vmatprep.subr.mxu0 %v2048
      %2078 = vmatpush1.msra.mxu0 %v2047
      %2079 = vmatprep.subr.mxu0 %v2051
      %2080 = vmatpush1.msra.mxu0 %v2050
      %2081 = vmatprep.subr.mxu0 0.0
      %2082 = vmatpush1.msra.mxu0 0.0
      %2083 = vmatprep.subr.mxu0 0.0
      %2084 = vmatpush1.msra.mxu0 0.0
      %2085 = vmatprep.subr.mxu0 0.0
      %2086 = vmatpush1.msra.mxu0 0.0
      %2087 = vmatprep.subr.mxu0 0.0
      %2088 = vmatpush1.msra.mxu0 0.0
      %2089 = vmatprep.subr.mxu0 0.0
      %2090 = vmatpush1.msra.mxu0 0.0
      %2091 = vmatprep.subr.mxu0 0.0
      %2092 = vmatpush1.msra.mxu0 0.0
      %2093 = vmatprep.subr.mxu0 0.0
      %2094 = vmatpush1.msra.mxu0 0.0
      %2095 = vmatprep.subr.mxu0 0.0
      %2096 = vmatpush1.msra.mxu0 0.0
      %2097 = vmatprep.subr.mxu0 0.0
      %2098 = vmatpush1.msra.mxu0 0.0
      %2099 = vmatprep.subr.mxu0 0.0
      %2100 = vmatpush1.msra.mxu0 0.0
      %2101 = vmatprep.subr.mxu0 0.0
      %2102 = vmatpush1.msra.mxu0 0.0
      %2103 = vmatprep.subr.mxu0 0.0
      %2104 = vmatpush1.msra.mxu0 0.0
      %2105 = vmatprep.subr.mxu0 0.0
      %2106 = vmatpush1.msra.mxu0 0.0
      %2107 = vmatprep.subr.mxu0 0.0
      %2108 = vmatpush1.msra.mxu0 0.0
      %2109 = vmatprep.subr.mxu0 0.0
      %2110 = vmatpush1.msra.mxu0 0.0
      %2111 = vmatprep.subr.mxu0 0.0
      %2112 = vmatpush1.msra.mxu0 0.0
      %2113 = vmatprep.subr.mxu0 0.0
      %2114 = vmatpush1.msra.mxu0 0.0
      %2115 = vmatprep.subr.mxu0 0.0
      %2116 = vmatpush1.msra.mxu0 0.0
      %2117 = vmatprep.subr.mxu0 0.0
      %2118 = vmatpush1.msra.mxu0 0.0
      %2119 = vmatprep.subr.mxu0 0.0
      %2120 = vmatpush1.msra.mxu0 0.0
      %2121 = vmatprep.subr.mxu0 0.0
      %2122 = vmatpush1.msra.mxu0 0.0
      %2123 = vmatprep.subr.mxu0 0.0
      %2124 = vmatpush1.msra.mxu0 0.0
      %2125 = vmatprep.subr.mxu0 0.0
      %2126 = vmatpush1.msra.mxu0 0.0
      %2127 = vmatprep.subr.mxu0 0.0
      %2128 = vmatpush1.msra.mxu0 0.0
      %2129 = vmatprep.subr.mxu0 0.0
      %2130 = vmatpush1.msra.mxu0 0.0
      %2131 = vmatprep.subr.mxu0 0.0
      %2132 = vmatpush1.msra.mxu0 0.0
      %2133 = vmatprep.subr.mxu0 0.0
      %2134 = vmatpush1.msra.mxu0 0.0
      %2135 = vmatprep.subr.mxu0 0.0
      %2136 = vmatpush1.msra.mxu0 0.0
      %2137 = vmatprep.mubr.f32.mxu0 0.0
      %2138 = vmatmul.mubr.f32.gmra.mrb[0].mxu0 %v2071
      %v2139 = vpop.f32.mrb[0].mxu0
      %v2140 = vadd.f32 %v2058, %v2139
      %v2141 = vpop.f32.mrb[0].mxu0
      %v2142 = vadd.f32 %v2062, %v2141
      %2143 = vdwg.mxu0
      %2144 = vmatprep.subr.mxu0 0.0
      %2145 = vmatpush1.msra.mxu0 %v2043
      %2146 = vmatprep.subr.mxu0 0.0
      %2147 = vmatpush1.msra.mxu0 %v2046
      %2148 = vmatprep.subr.mxu0 0.0
      %2149 = vmatpush1.msra.mxu0 %v2049
      %2150 = vmatprep.subr.mxu0 0.0
      %2151 = vmatpush1.msra.mxu0 %v2052
      %2152 = vmatprep.subr.mxu0 0.0
      %2153 = vmatpush1.msra.mxu0 0.0
      %2154 = vmatprep.subr.mxu0 0.0
      %2155 = vmatpush1.msra.mxu0 0.0
      %2156 = vmatprep.subr.mxu0 0.0
      %2157 = vmatpush1.msra.mxu0 0.0
      %2158 = vmatprep.subr.mxu0 0.0
      %2159 = vmatpush1.msra.mxu0 0.0
      %2160 = vmatprep.subr.mxu0 0.0
      %2161 = vmatpush1.msra.mxu0 0.0
      %2162 = vmatprep.subr.mxu0 0.0
      %2163 = vmatpush1.msra.mxu0 0.0
      %2164 = vmatprep.subr.mxu0 0.0
      %2165 = vmatpush1.msra.mxu0 0.0
      %2166 = vmatprep.subr.mxu0 0.0
      %2167 = vmatpush1.msra.mxu0 0.0
      %2168 = vmatprep.subr.mxu0 0.0
      %2169 = vmatpush1.msra.mxu0 0.0
      %2170 = vmatprep.subr.mxu0 0.0
      %2171 = vmatpush1.msra.mxu0 0.0
      %2172 = vmatprep.subr.mxu0 0.0
      %2173 = vmatpush1.msra.mxu0 0.0
      %2174 = vmatprep.subr.mxu0 0.0
      %2175 = vmatpush1.msra.mxu0 0.0
      %2176 = vmatprep.subr.mxu0 0.0
      %2177 = vmatpush1.msra.mxu0 0.0
      %2178 = vmatprep.subr.mxu0 0.0
      %2179 = vmatpush1.msra.mxu0 0.0
      %2180 = vmatprep.subr.mxu0 0.0
      %2181 = vmatpush1.msra.mxu0 0.0
      %2182 = vmatprep.subr.mxu0 0.0
      %2183 = vmatpush1.msra.mxu0 0.0
      %2184 = vmatprep.subr.mxu0 0.0
      %2185 = vmatpush1.msra.mxu0 0.0
      %2186 = vmatprep.subr.mxu0 0.0
      %2187 = vmatpush1.msra.mxu0 0.0
      %2188 = vmatprep.subr.mxu0 0.0
      %2189 = vmatpush1.msra.mxu0 0.0
      %2190 = vmatprep.subr.mxu0 0.0
      %2191 = vmatpush1.msra.mxu0 0.0
      %2192 = vmatprep.subr.mxu0 0.0
      %2193 = vmatpush1.msra.mxu0 0.0
      %2194 = vmatprep.subr.mxu0 0.0
      %2195 = vmatpush1.msra.mxu0 0.0
      %2196 = vmatprep.subr.mxu0 0.0
      %2197 = vmatpush1.msra.mxu0 0.0
      %2198 = vmatprep.subr.mxu0 0.0
      %2199 = vmatpush1.msra.mxu0 0.0
      %2200 = vmatprep.subr.mxu0 0.0
      %2201 = vmatpush1.msra.mxu0 0.0
      %2202 = vmatprep.subr.mxu0 0.0
      %2203 = vmatpush1.msra.mxu0 0.0
      %2204 = vmatprep.subr.mxu0 0.0
      %2205 = vmatpush1.msra.mxu0 0.0
      %2206 = vmatprep.subr.mxu0 0.0
      %2207 = vmatpush1.msra.mxu0 0.0
      %2208 = vmatprep.mubr.f32.mxu0 0.0
      %2209 = vmatmul.mubr.f32.gmra.mrb[0].mxu0 %v2071
      %v2210 = vpop.f32.mrb[0].mxu0
      %v2211 = vadd.f32 %v2066, %v2210
      %v2212 = vpop.f32.mrb[0].mxu0
      %2213 = vdwg.mxu0
      %vm2214 = vcmp.gt.f32.partialorder %v2140, 0.0
      %vm2215 = vcmp.gt.f32.partialorder %v2142, 0.0
      %vm2216 = vcmp.gt.f32.partialorder %v2211, 0.0
      %v2217 = vmul.f32 %v2140, 0.1
      %v2218 = vmul.f32 %v2142, 0.1
      %v2219 = vmul.f32 %v2211, 0.1
      %v2220 = vsel %vm2214, %v2140, %v2217
      %v2221 = vsel %vm2215, %v2142, %v2218
      %v2222 = vsel %vm2216, %v2211, %v2219
      %v2223 = vld [vmem:[%s7] sm:$0xff]
      %v2224 = vld [vmem:[%s7 + $0x8] sm:$0xff]
      %v2225 = vld [vmem:[%s7 + $0x10] sm:$0xff]
      %v2226 = vld [vmem:[#allocation2] sm:$0x1]
      %v2228 = vlaneseq
      %v2229 = vshrl.u32 %v2228, 7
      %v2230 = vsub.s32 0, %v2229
      %v2231 = vrot.slane %v2226, %v2230
      %2232 = vset.pattern.permute.xlu0 0
      %2233 = vperm.xlu0 %2232, %v2231
      %v2234 = vpop.permute.xlu0 %2233
      %2236 = vmatprep.subr.mxu0 %v2221
      %2237 = vmatpush1.xpose.msra.mxu0 %v2220
      %2238 = vmatprep.subr.mxu0 0.0
      %2239 = vmatpush1.xpose.msra.mxu0 0.0
      %2240 = vmatprep.subr.mxu0 0.0
      %2241 = vmatpush1.xpose.msra.mxu0 0.0
      %2242 = vmatprep.subr.mxu0 0.0
      %2243 = vmatpush1.xpose.msra.mxu0 0.0
      %2244 = vmatprep.subr.mxu0 0.0
      %2245 = vmatpush1.xpose.msra.mxu0 0.0
      %2246 = vmatprep.subr.mxu0 0.0
      %2247 = vmatpush1.xpose.msra.mxu0 0.0
      %2248 = vmatprep.subr.mxu0 0.0
      %2249 = vmatpush1.xpose.msra.mxu0 0.0
      %2250 = vmatprep.subr.mxu0 0.0
      %2251 = vmatpush1.xpose.msra.mxu0 0.0
      %2252 = vmatprep.subr.mxu0 0.0
      %2253 = vmatpush1.xpose.msra.mxu0 0.0
      %2254 = vmatprep.subr.mxu0 0.0
      %2255 = vmatpush1.xpose.msra.mxu0 0.0
      %2256 = vmatprep.subr.mxu0 0.0
      %2257 = vmatpush1.xpose.msra.mxu0 0.0
      %2258 = vmatprep.subr.mxu0 0.0
      %2259 = vmatpush1.xpose.msra.mxu0 0.0
      %2260 = vmatprep.subr.mxu0 0.0
      %2261 = vmatpush1.xpose.msra.mxu0 0.0
      %2262 = vmatprep.subr.mxu0 0.0
      %2263 = vmatpush1.xpose.msra.mxu0 0.0
      %2264 = vmatprep.subr.mxu0 0.0
      %2265 = vmatpush1.xpose.msra.mxu0 0.0
      %2266 = vmatprep.subr.mxu0 0.0
      %2267 = vmatpush1.xpose.msra.mxu0 0.0
      %2268 = vmatprep.subr.mxu0 0.0
      %2269 = vmatpush1.xpose.msra.mxu0 0.0
      %2270 = vmatprep.subr.mxu0 0.0
      %2271 = vmatpush1.xpose.msra.mxu0 0.0
      %2272 = vmatprep.subr.mxu0 0.0
      %2273 = vmatpush1.xpose.msra.mxu0 0.0
      %2274 = vmatprep.subr.mxu0 0.0
      %2275 = vmatpush1.xpose.msra.mxu0 0.0
      %2276 = vmatprep.subr.mxu0 0.0
      %2277 = vmatpush1.xpose.msra.mxu0 0.0
      %2278 = vmatprep.subr.mxu0 0.0
      %2279 = vmatpush1.xpose.msra.mxu0 0.0
      %2280 = vmatprep.subr.mxu0 0.0
      %2281 = vmatpush1.xpose.msra.mxu0 0.0
      %2282 = vmatprep.subr.mxu0 0.0
      %2283 = vmatpush1.xpose.msra.mxu0 0.0
      %2284 = vmatprep.subr.mxu0 0.0
      %2285 = vmatpush1.xpose.msra.mxu0 0.0
      %2286 = vmatprep.subr.mxu0 0.0
      %2287 = vmatpush1.xpose.msra.mxu0 0.0
      %2288 = vmatprep.subr.mxu0 0.0
      %2289 = vmatpush1.xpose.msra.mxu0 0.0
      %2290 = vmatprep.subr.mxu0 0.0
      %2291 = vmatpush1.xpose.msra.mxu0 0.0
      %2292 = vmatprep.subr.mxu0 0.0
      %2293 = vmatpush1.xpose.msra.mxu0 0.0
      %2294 = vmatprep.subr.mxu0 0.0
      %2295 = vmatpush1.xpose.msra.mxu0 0.0
      %2296 = vmatprep.subr.mxu0 0.0
      %2297 = vmatpush1.xpose.msra.mxu0 0.0
      %2298 = vmatprep.subr.mxu0 0.0
      %2299 = vmatpush1.xpose.msra.mxu0 0.0
      %2300 = vmatprep.mubr.f32.mxu0 %v2224
      %2301 = vmatmul.mubr.f32.gmra.mrb[0].mxu0 %v2223
      %v2302 = vpop.f32.mrb[0].mxu0
      %v2303 = vadd.f32 %v2234, %v2302
      %v2304 = vpop.f32.mrb[0].mxu0
      %2305 = vdwg.mxu0
      %2306 = vmatprep.subr.mxu0 0.0
      %2307 = vmatpush1.xpose.msra.mxu0 %v2222
      %2308 = vmatprep.subr.mxu0 0.0
      %2309 = vmatpush1.xpose.msra.mxu0 0.0
      %2310 = vmatprep.subr.mxu0 0.0
      %2311 = vmatpush1.xpose.msra.mxu0 0.0
      %2312 = vmatprep.subr.mxu0 0.0
      %2313 = vmatpush1.xpose.msra.mxu0 0.0
      %2314 = vmatprep.subr.mxu0 0.0
      %2315 = vmatpush1.xpose.msra.mxu0 0.0
      %2316 = vmatprep.subr.mxu0 0.0
      %2317 = vmatpush1.xpose.msra.mxu0 0.0
      %2318 = vmatprep.subr.mxu0 0.0
      %2319 = vmatpush1.xpose.msra.mxu0 0.0
      %2320 = vmatprep.subr.mxu0 0.0
      %2321 = vmatpush1.xpose.msra.mxu0 0.0
      %2322 = vmatprep.subr.mxu0 0.0
      %2323 = vmatpush1.xpose.msra.mxu0 0.0
      %2324 = vmatprep.subr.mxu0 0.0
      %2325 = vmatpush1.xpose.msra.mxu0 0.0
      %2326 = vmatprep.subr.mxu0 0.0
      %2327 = vmatpush1.xpose.msra.mxu0 0.0
      %2328 = vmatprep.subr.mxu0 0.0
      %2329 = vmatpush1.xpose.msra.mxu0 0.0
      %2330 = vmatprep.subr.mxu0 0.0
      %2331 = vmatpush1.xpose.msra.mxu0 0.0
      %2332 = vmatprep.subr.mxu0 0.0
      %2333 = vmatpush1.xpose.msra.mxu0 0.0
      %2334 = vmatprep.subr.mxu0 0.0
      %2335 = vmatpush1.xpose.msra.mxu0 0.0
      %2336 = vmatprep.subr.mxu0 0.0
      %2337 = vmatpush1.xpose.msra.mxu0 0.0
      %2338 = vmatprep.subr.mxu0 0.0
      %2339 = vmatpush1.xpose.msra.mxu0 0.0
      %2340 = vmatprep.subr.mxu0 0.0
      %2341 = vmatpush1.xpose.msra.mxu0 0.0
      %2342 = vmatprep.subr.mxu0 0.0
      %2343 = vmatpush1.xpose.msra.mxu0 0.0
      %2344 = vmatprep.subr.mxu0 0.0
      %2345 = vmatpush1.xpose.msra.mxu0 0.0
      %2346 = vmatprep.subr.mxu0 0.0
      %2347 = vmatpush1.xpose.msra.mxu0 0.0
      %2348 = vmatprep.subr.mxu0 0.0
      %2349 = vmatpush1.xpose.msra.mxu0 0.0
      %2350 = vmatprep.subr.mxu0 0.0
      %2351 = vmatpush1.xpose.msra.mxu0 0.0
      %2352 = vmatprep.subr.mxu0 0.0
      %2353 = vmatpush1.xpose.msra.mxu0 0.0
      %2354 = vmatprep.subr.mxu0 0.0
      %2355 = vmatpush1.xpose.msra.mxu0 0.0
      %2356 = vmatprep.subr.mxu0 0.0
      %2357 = vmatpush1.xpose.msra.mxu0 0.0
      %2358 = vmatprep.subr.mxu0 0.0
      %2359 = vmatpush1.xpose.msra.mxu0 0.0
      %2360 = vmatprep.subr.mxu0 0.0
      %2361 = vmatpush1.xpose.msra.mxu0 0.0
      %2362 = vmatprep.subr.mxu0 0.0
      %2363 = vmatpush1.xpose.msra.mxu0 0.0
      %2364 = vmatprep.subr.mxu0 0.0
      %2365 = vmatpush1.xpose.msra.mxu0 0.0
      %2366 = vmatprep.subr.mxu0 0.0
      %2367 = vmatpush1.xpose.msra.mxu0 0.0
      %2368 = vmatprep.subr.mxu0 0.0
      %2369 = vmatpush1.xpose.msra.mxu0 0.0
      %2370 = vmatprep.mubr.f32.mxu0 0.0
      %2371 = vmatmul.mubr.f32.gmra.mrb[0].mxu0 %v2225
      %v2372 = vpop.f32.mrb[0].mxu0
      %v2373 = vadd.f32 %v2303, %v2372
      %v2374 = vpop.f32.mrb[0].mxu0
      %2375 = vdwg.mxu0
      %v2376 = vsub.f32 0.0, %v2373
      %v2377 = vmul.f32 %v2376, 1.442695
      %v2378 = vpow.pop %v2377
      %v2379 = vadd.f32 %v2378, 1.0
      %v2380 = vrcp.pop %v2379
      %v2381 = vmul.f32 1.0, %v2380
      %vm2382 = vcmask 64512
      %2383 = vst.msk [vmem:[%s337] sm:$0xff] %vm2382, %v2381
      %p2384 = scmp.lt.s32.totalorder %s22, 1
      %s2385 = scalar_select %p2384, %s22, 1
      %s2386 = smul.addr %s2385, 8
      %s2387 = scalar_lea.vmem %s9, %s2386
      // Predicated region
      $region57: #{relation_net_forward.1} parent=55 // pred_check
        %p2388 = pneg %p234
      $region58: #{relation_net_forward.1} parent=55 // pred_check_branch
        %2390 = sbr.rel (%p2388) target = $region60
      $region59: #{relation_net_forward.1} parent=55 // pred_region
        _
      $region60: #{relation_net_forward.1} parent=55 // pred_fallthru
        _
    $region56: #{relation_net_forward.1} parent=5 // pred_fallthru
      _
    %p2391 = scmp.le.s32.totalorder 2, %s17
    // Predicated region
    $region61: #{relation_net_forward.1} parent=5 // pred_check
      %p2392 = pneg %p2391
    $region62: #{relation_net_forward.1} parent=5 // pred_check_branch
      %2394 = sbr.rel (%p2392) target = $region64
    $region63: #{relation_net_forward.1} parent=5 // pred_region
      %s2395 = ssub.s32 %s17, 2
      // Predicated region
      $region65: #{relation_net_forward.1} parent=63 // pred_check
        %p2396 = pneg %p240
      $region66: #{relation_net_forward.1} parent=63 // pred_check_branch
        %2398 = sbr.rel (%p2396) target = $region68
      $region67: #{relation_net_forward.1} parent=63 // pred_region
        %p2399 = scmp.lt.s32.totalorder %s23, 1
        %s2400 = scalar_select %p2399, %s23, 1
        %s2401 = smul.addr %s2400, 8
        %s2402 = scalar_lea.vmem %s9, %s2401
      $region68: #{relation_net_forward.1} parent=63 // pred_fallthru
        _
    $region64: #{relation_net_forward.1} parent=5 // pred_fallthru
      _
  $region6: #{relation_net_forward.1} parent=0 // loop_footer
    %s21 = sadd.s32 1, %s17
  $region7: #{relation_net_forward.1} parent=0 // loop_footer_branch
    %16 = sbr.rel target = $region3
  $region8: #{relation_net_forward.1} parent=0 // loop_exit
    _

</llo_original>
